<compile_context>
chip_gen: v6e
topology: v6e:2x2x1
jax: 0.10.0
libtpu: 0.0.40
codegen_flags: <defaults>
</compile_context>

<pallas_src>
import jax
import jax.numpy as jnp
from jax import lax
from jax.experimental import pallas as pl
from jax.experimental.pallas import tpu as pltpu


def _round_up(x, m):
    return ((x + m - 1) // m) * m


def _const_spec(shape, single_buffer):
    """BlockSpec for a grid-invariant (weight/bias) input over a 1-D grid."""
    nd = len(shape)
    index_map = lambda i: (0,) * nd
    if single_buffer:
        # Weights never change across the grid; default double-buffering would
        # just waste VMEM (critical on v7x's 64 MiB physical VMEM).
        return pl.BlockSpec(shape, index_map, pipeline_mode=pl.Buffered(1))
    return pl.BlockSpec(shape, index_map)


# --------------------------------------------------------------------------
# Kernel A: fused lin_1 -> ReLU -> lin_2 -> (@ W_ih0 + b0) over a row tile of the
# flattened (T*B, D) activation.  Produces layer-0 input-side gates for all steps.
# --------------------------------------------------------------------------
def _mlp_gates_kernel(x_ref, w1_ref, b1_ref, w2_ref, b2_ref, wih_ref, bg_ref, o_ref):
    cd = w1_ref.dtype  # matmul operand dtype (bf16 or f32); accumulate in f32
    h = jnp.dot(x_ref[...].astype(cd), w1_ref[...],
                preferred_element_type=jnp.float32) + b1_ref[...]
    h = jnp.maximum(h, 0.0)                                   # ReLU
    y = jnp.dot(h.astype(cd), w2_ref[...],
                preferred_element_type=jnp.float32) + b2_ref[...]
    g = jnp.dot(y.astype(cd), wih_ref[...],
                preferred_element_type=jnp.float32) + bg_ref[...]
    o_ref[...] = g.astype(o_ref.dtype)


def _mlp_gates(x2d, w1, b1, w2, b2, w_ih0, b_g0, *, tm, single_buffer):
    R, d_in = x2d.shape
    G = w_ih0.shape[1]
    return pl.pallas_call(
        _mlp_gates_kernel,
        out_shape=jax.ShapeDtypeStruct((R, G), jnp.float32),
        grid_spec=pltpu.PrefetchScalarGridSpec(
            num_scalar_prefetch=0,
            grid=(pl.cdiv(R, tm),),
            in_specs=[
                pl.BlockSpec((tm, d_in), lambda i: (i, 0)),
                _const_spec(w1.shape, single_buffer),
                _const_spec(b1.shape, single_buffer),
                _const_spec(w2.shape, single_buffer),
                _const_spec(b2.shape, single_buffer),
                _const_spec(w_ih0.shape, single_buffer),
                _const_spec(b_g0.shape, single_buffer),
            ],
            out_specs=pl.BlockSpec((tm, G), lambda i: (i, 0)),
        ),
        compiler_params=pltpu.CompilerParams(
            dimension_semantics=("parallel",)),
    )(x2d, w1, b1, w2, b2, w_ih0, b_g0)


# --------------------------------------------------------------------------
# Kernel B: input-side gates GEMM for layers >= 1 (all timesteps batched).
# --------------------------------------------------------------------------
def _gates_gemm_kernel(x_ref, w_ref, b_ref, o_ref):
    cd = w_ref.dtype
    o_ref[...] = (jnp.dot(x_ref[...].astype(cd), w_ref[...],
                          preferred_element_type=jnp.float32)
                  + b_ref[...]).astype(o_ref.dtype)


def _gates_gemm(x2d, w_ih, b_g, *, tm, single_buffer):
    R, d_in = x2d.shape
    G = w_ih.shape[1]
    return pl.pallas_call(
        _gates_gemm_kernel,
        out_shape=jax.ShapeDtypeStruct((R, G), jnp.float32),
        grid_spec=pltpu.PrefetchScalarGridSpec(
            num_scalar_prefetch=0,
            grid=(pl.cdiv(R, tm),),
            in_specs=[
                pl.BlockSpec((tm, d_in), lambda i: (i, 0)),
                _const_spec(w_ih.shape, single_buffer),
                _const_spec(b_g.shape, single_buffer),
            ],
            out_specs=pl.BlockSpec((tm, G), lambda i: (i, 0)),
        ),
        compiler_params=pltpu.CompilerParams(
            dimension_semantics=("parallel",)),
    )(x2d, w_ih, b_g)


# --------------------------------------------------------------------------
# Kernel C: LSTM recurrence.  Grid iterates over time chunks of TT steps; h/c live
# in VMEM scratch and persist across grid steps.  Per step only h @ W_hh is done
# (x-side gates are precomputed).  PyTorch gate order [i, f, g, o].
# --------------------------------------------------------------------------
def _lstm_rec_kernel(gx_ref, whh_ref, out_ref, h_scr, c_scr):
    @pl.when(pl.program_id(0) == 0)
    def _():
        h_scr[...] = jnp.zeros_like(h_scr)
        c_scr[...] = jnp.zeros_like(c_scr)

    Hp = h_scr.shape[1]
    w_hh = whh_ref[...]
    cd = w_hh.dtype
    tt = gx_ref.shape[0]

    def step(i, carry):
        gates = gx_ref[i] + jnp.dot(h_scr[...].astype(cd), w_hh,
                                    preferred_element_type=jnp.float32)
        # Hp % 128 == 0, so every gate slice is lane-aligned (pure VPU/EUP math, f32).
        i_g = jax.nn.sigmoid(gates[:, 0 * Hp:1 * Hp])
        f_g = jax.nn.sigmoid(gates[:, 1 * Hp:2 * Hp])
        g_g = jnp.tanh(gates[:, 2 * Hp:3 * Hp])
        o_g = jax.nn.sigmoid(gates[:, 3 * Hp:4 * Hp])
        c_new = f_g * c_scr[...] + i_g * g_g
        h_new = o_g * jnp.tanh(c_new)
        c_scr[...] = c_new
        h_scr[...] = h_new
        out_ref[i] = h_new.astype(out_ref.dtype)
        return carry

    lax.fori_loop(0, tt, step, 0, unroll=True)


def _lstm_recurrence(gx_tbd, w_hh, *, tt, single_buffer):
    """gx_tbd: (T, Bp, 4*Hp) precomputed input-side gates; returns (T, Bp, Hp)."""
    T, Bp, G = gx_tbd.shape
    Hp = G // 4
    return pl.pallas_call(
        _lstm_rec_kernel,
        out_shape=jax.ShapeDtypeStruct((T, Bp, Hp), jnp.float32),
        grid_spec=pltpu.PrefetchScalarGridSpec(
            num_scalar_prefetch=0,
            grid=(T // tt,),
            in_specs=[
                pl.BlockSpec((tt, Bp, G), lambda c: (c, 0, 0)),
                _const_spec(w_hh.shape, single_buffer),
            ],
            out_specs=pl.BlockSpec((tt, Bp, Hp), lambda c: (c, 0, 0)),
            scratch_shapes=[
                pltpu.VMEM((Bp, Hp), jnp.float32),   # h (persists across chunks)
                pltpu.VMEM((Bp, Hp), jnp.float32),   # c
            ],
        ),
        # Time recurrence is sequential; h/c scratch carries across grid steps,
        # so this axis MUST stay "arbitrary" (never "parallel").
        compiler_params=pltpu.CompilerParams(
            dimension_semantics=("arbitrary",)),
    )(gx_tbd, w_hh)


# --------------------------------------------------------------------------
# Parameter padding (H -> Hp per gate block, lossless) and full forward pass.
# --------------------------------------------------------------------------
def _pad_gate_cols(w, H, Hp):
    """Zero-pad each of the 4 gate blocks along the last axis from H to Hp."""
    if Hp == H:
        return w
    parts = jnp.split(w, 4, axis=-1)
    widths = [(0, 0)] * (w.ndim - 1) + [(0, Hp - H)]
    return jnp.concatenate([jnp.pad(p, widths) for p in parts], axis=-1)


def _prepare_lstm_params(lstm_params, H, Hp, compute_dtype):
    prepared = []
    for layer, (w_ih, w_hh, b) in enumerate(lstm_params):
        w_ih_p = _pad_gate_cols(w_ih, H, Hp)
        if layer > 0 and Hp != H:
            # Input of layers >= 1 is the Hp-padded hidden state; its padded
            # columns are exactly zero, so zero rows here are lossless.
            w_ih_p = jnp.pad(w_ih_p, ((0, Hp - H), (0, 0)))
        w_hh_p = _pad_gate_cols(jnp.pad(w_hh, ((0, Hp - H), (0, 0))), H, Hp)
        b_p = _pad_gate_cols(b, H, Hp)
        prepared.append((w_ih_p.astype(compute_dtype),
                         w_hh_p.astype(compute_dtype),
                         b_p.astype(jnp.float32)))
    return prepared


def _forward_impl(x, params, compute_dtype, single_buffer):
    B, T, d_in = x.shape
    H = params["lstm"][0][1].shape[0]          # w_hh: (H, 4H)
    Hp = _round_up(H, 128)                     # lane-aligned gates / stores
    Bp = _round_up(B, 8)                       # full sublanes

    cd = compute_dtype
    w1 = params["w1"].astype(cd)
    w2 = params["w2"].astype(cd)
    b1 = params["b1"].astype(jnp.float32)
    b2 = params["b2"].astype(jnp.float32)
    lstm_p = _prepare_lstm_params(params["lstm"], H, Hp, cd)

    # Pad batch once and go time-major once; all inter-kernel activations stay
    # time-major (T*Bp, D), so there are no per-layer HBM transposes.
    if Bp != B:
        x = jnp.pad(x, ((0, Bp - B), (0, 0), (0, 0)))
    x2d = jnp.transpose(x, (1, 0, 2)).reshape(T * Bp, d_in)

    R = T * Bp
    tm = R if R <= 512 else 512                              # row tile for GEMMs
    tt = next(v for v in (16, 8, 4, 2, 1) if T % v == 0)     # time chunk size

    # Layer 0: fused lin_1 -> ReLU -> lin_2 -> @W_ih0 + b0 over all timesteps.
    w_ih0, w_hh0, b0 = lstm_p[0]
    gx = _mlp_gates(x2d, w1, b1, w2, b2, w_ih0, b0, tm=tm, single_buffer=single_buffer)
    h = _lstm_recurrence(gx.reshape(T, Bp, 4 * Hp), w_hh0, tt=tt,
                         single_buffer=single_buffer)

    # Layers >= 1: batched input-gates GEMM + serial recurrence.
    for (w_ih, w_hh, b) in lstm_p[1:]:
        gx = _gates_gemm(h.reshape(R, Hp), w_ih, b, tm=tm, single_buffer=single_buffer)
        h = _lstm_recurrence(gx.reshape(T, Bp, 4 * Hp), w_hh, tt=tt,
                             single_buffer=single_buffer)

    # Back to batch-first; strip batch/hidden padding.
    return jnp.transpose(h, (1, 0, 2))[:B, :, :H]


def encoder_lstm_forward(x, params, *, compute_dtype=jnp.float32):
    """x: (B, T, input_size) batch-first, like the PyTorch module."""
    try:
        return _forward_impl(x, params, compute_dtype, single_buffer=True)
    except Exception:
        # If the installed Pallas rejects pipeline_mode=pl.Buffered(1), fall back
        # to default double-buffered weights (correctness identical).
        return _forward_impl(x, params, compute_dtype, single_buffer=False)


# --------------------------------------------------------------------------
# Pure-JAX reference (f32, for correctness check)
# --------------------------------------------------------------------------
def encoder_lstm_reference(x, params):
    B, T, _ = x.shape
    h = jnp.maximum(x @ params["w1"] + params["b1"][0], 0.0)
    h = h @ params["w2"] + params["b2"][0]
    for (w_ih, w_hh, b) in params["lstm"]:
        H = w_hh.shape[0]
        h_t = jnp.zeros((B, H), jnp.float32)
        c_t = jnp.zeros((B, H), jnp.float32)
        outs = []
        for t in range(T):
            gates = h[:, t, :] @ w_ih + h_t @ w_hh + b[0]
            i_g = jax.nn.sigmoid(gates[:, 0 * H:1 * H])
            f_g = jax.nn.sigmoid(gates[:, 1 * H:2 * H])
            g_g = jnp.tanh(gates[:, 2 * H:3 * H])
            o_g = jax.nn.sigmoid(gates[:, 3 * H:4 * H])
            c_t = f_g * c_t + i_g * g_g
            h_t = o_g * jnp.tanh(c_t)
            outs.append(h_t)
        h = jnp.stack(outs, axis=1)
    return h


def init_params(key, input_size, lin_hidden_size, hidden_size,
                lin_output_size, num_layers):
    ks = jax.random.split(key, 4 + 3 * num_layers)
    s = 0.1
    params = {
        "w1": s * jax.random.normal(ks[0], (input_size, lin_hidden_size), jnp.float32),
        "b1": s * jax.random.normal(ks[1], (1, lin_hidden_size), jnp.float32),
        "w2": s * jax.random.normal(ks[2], (lin_hidden_size, lin_output_size), jnp.float32),
        "b2": s * jax.random.normal(ks[3], (1, lin_output_size), jnp.float32),
        "lstm": [],
    }
    d_in = lin_output_size
    for l in range(num_layers):
        k1, k2, k3 = ks[4 + 3 * l:7 + 3 * l]
        w_ih = s * jax.random.normal(k1, (d_in, 4 * hidden_size), jnp.float32)
        w_hh = s * jax.random.normal(k2, (hidden_size, 4 * hidden_size), jnp.float32)
        b = s * jax.random.normal(k3, (1, 4 * hidden_size), jnp.float32)  # b_ih + b_hh folded
        params["lstm"].append((w_ih, w_hh, b))
        d_in = hidden_size
    return params


if __name__ == "__main__":
    # Small shapes consistent with the module's forward:
    #   input (B, T, input_size) -> output (B, T, hidden_size)
    B, T = 2, 8
    input_size, lin_hidden_size, lin_output_size = 16, 32, 16
    hidden_size, num_layers = 32, 2

    key = jax.random.PRNGKey(0)
    k_x, k_p = jax.random.split(key)
    x = jax.random.normal(k_x, (B, T, input_size), jnp.float32)
    params = init_params(k_p, input_size, lin_hidden_size, hidden_size,
                         lin_output_size, num_layers)

    ref = encoder_lstm_reference(x, params)

    # f32 matmul-operand path: tight check against the pure-JAX reference.
    out_f32 = jax.block_until_ready(
        encoder_lstm_forward(x, params, compute_dtype=jnp.float32))
    assert out_f32.shape == (B, T, hidden_size)
    assert jnp.allclose(out_f32, ref, atol=1e-4, rtol=1e-4), "f32 mismatch vs reference"

    # bf16 matmul-operand path (perf configuration for v6e/v7x): loose check.
    out_bf16 = jax.block_until_ready(
        encoder_lstm_forward(x, params, compute_dtype=jnp.bfloat16))
    assert out_bf16.shape == (B, T, hidden_size)
    assert jnp.allclose(out_bf16, ref, atol=7.5e-2, rtol=7.5e-2), "bf16 mismatch vs reference"

    print("KERNEL_OK")
</pallas_src>

<mosaic_0001>
module attributes {stable_mosaic.version = 11 : i64} {
  func.func @_mlp_gates_kernel(%arg0: i32, %arg1: memref<64x16xf32, #tpu.memory_space<vmem>>, %arg2: memref<16x32xf32, #tpu.memory_space<vmem>>, %arg3: memref<1x32xf32, #tpu.memory_space<vmem>>, %arg4: memref<32x16xf32, #tpu.memory_space<vmem>>, %arg5: memref<1x16xf32, #tpu.memory_space<vmem>>, %arg6: memref<16x512xf32, #tpu.memory_space<vmem>>, %arg7: memref<1x512xf32, #tpu.memory_space<vmem>>, %arg8: memref<64x512xf32, #tpu.memory_space<vmem>>) attributes {dimension_semantics = [#tpu.dimension_semantics<parallel>], iteration_bounds = array<i64: 1>, scalar_prefetch = 0 : i64, scratch_operands = 0 : i64, tpu.core_type = #tpu.core_type<tc>, window_params = [{transform_indices = @transform_0, window_bounds = array<i64: 64, 16>}, {pipeline_mode = #tpu.pipeline_mode<synchronous>, transform_indices = @transform_1, window_bounds = array<i64: 16, 32>}, {pipeline_mode = #tpu.pipeline_mode<synchronous>, transform_indices = @transform_2, window_bounds = array<i64: 1, 32>}, {pipeline_mode = #tpu.pipeline_mode<synchronous>, transform_indices = @transform_3, window_bounds = array<i64: 32, 16>}, {pipeline_mode = #tpu.pipeline_mode<synchronous>, transform_indices = @transform_4, window_bounds = array<i64: 1, 16>}, {pipeline_mode = #tpu.pipeline_mode<synchronous>, transform_indices = @transform_5, window_bounds = array<i64: 16, 512>}, {pipeline_mode = #tpu.pipeline_mode<synchronous>, transform_indices = @transform_6, window_bounds = array<i64: 1, 512>}, {transform_indices = @transform_7, window_bounds = array<i64: 64, 512>}]} {
    %c0 = arith.constant 0 : index
    %c0_0 = arith.constant 0 : index
    %0 = vector.load %arg1[%c0, %c0_0] : memref<64x16xf32, #tpu.memory_space<vmem>>, vector<64x16xf32>
    %c0_1 = arith.constant 0 : index
    %c0_2 = arith.constant 0 : index
    %1 = vector.load %arg2[%c0_1, %c0_2] : memref<16x32xf32, #tpu.memory_space<vmem>>, vector<16x32xf32>
    %cst = arith.constant dense<0.000000e+00> : vector<64x32xf32>
    %2 = tpu.matmul %0, %1, %cst {dimension_numbers = #tpu.dot_dimension_numbers<[1], [0], [0], [1], [0, 0, 1, 1], [], []>} : vector<64x16xf32>, vector<16x32xf32>, vector<64x32xf32> -> vector<64x32xf32>
    %c0_3 = arith.constant 0 : index
    %c0_4 = arith.constant 0 : index
    %3 = vector.load %arg3[%c0_3, %c0_4] : memref<1x32xf32, #tpu.memory_space<vmem>>, vector<1x32xf32>
    %4 = vector.broadcast %3 : vector<1x32xf32> to vector<64x32xf32>
    %5 = arith.addf %2, %4 : vector<64x32xf32>
    %cst_5 = arith.constant 0.000000e+00 : f32
    %6 = vector.broadcast %cst_5 : f32 to vector<64x32xf32>
    %7 = arith.maximumf %5, %6 : vector<64x32xf32>
    %c0_6 = arith.constant 0 : index
    %c0_7 = arith.constant 0 : index
    %8 = vector.load %arg4[%c0_6, %c0_7] : memref<32x16xf32, #tpu.memory_space<vmem>>, vector<32x16xf32>
    %cst_8 = arith.constant dense<0.000000e+00> : vector<64x16xf32>
    %9 = tpu.matmul %7, %8, %cst_8 {dimension_numbers = #tpu.dot_dimension_numbers<[1], [0], [0], [1], [0, 0, 1, 1], [], []>} : vector<64x32xf32>, vector<32x16xf32>, vector<64x16xf32> -> vector<64x16xf32>
    %c0_9 = arith.constant 0 : index
    %c0_10 = arith.constant 0 : index
    %10 = vector.load %arg5[%c0_9, %c0_10] : memref<1x16xf32, #tpu.memory_space<vmem>>, vector<1x16xf32>
    %11 = vector.broadcast %10 : vector<1x16xf32> to vector<64x16xf32>
    %12 = arith.addf %9, %11 : vector<64x16xf32>
    %c0_11 = arith.constant 0 : index
    %c0_12 = arith.constant 0 : index
    %13 = vector.load %arg6[%c0_11, %c0_12] : memref<16x512xf32, #tpu.memory_space<vmem>>, vector<16x512xf32>
    %cst_13 = arith.constant dense<0.000000e+00> : vector<64x512xf32>
    %14 = tpu.matmul %12, %13, %cst_13 {dimension_numbers = #tpu.dot_dimension_numbers<[1], [0], [0], [1], [0, 0, 1, 1], [], []>} : vector<64x16xf32>, vector<16x512xf32>, vector<64x512xf32> -> vector<64x512xf32>
    %c0_14 = arith.constant 0 : index
    %c0_15 = arith.constant 0 : index
    %15 = vector.load %arg7[%c0_14, %c0_15] : memref<1x512xf32, #tpu.memory_space<vmem>>, vector<1x512xf32>
    %16 = vector.broadcast %15 : vector<1x512xf32> to vector<64x512xf32>
    %17 = arith.addf %14, %16 : vector<64x512xf32>
    %c0_16 = arith.constant 0 : index
    %c0_17 = arith.constant 0 : index
    %18 = vector.load %arg8[%c0_16, %c0_17] : memref<64x512xf32, #tpu.memory_space<vmem>>, vector<64x512xf32>
    tpu.vector_store %arg8[%c0_16, %c0_17], %17 {strides = array<i32>} : memref<64x512xf32, #tpu.memory_space<vmem>>, vector<64x512xf32>,
    return
  }
  func.func @transform_0(%arg0: i32) -> (i32, i32) {
    %c0_i32 = arith.constant 0 : i32
    %c0_i32_0 = arith.constant 0 : i32
    return %arg0, %c0_i32 : i32, i32
  }
  func.func @transform_1(%arg0: i32) -> (i32, i32) {
    %c0_i32 = arith.constant 0 : i32
    %c0_i32_0 = arith.constant 0 : i32
    %c0_i32_1 = arith.constant 0 : i32
    return %c0_i32, %c0_i32_0 : i32, i32
  }
  func.func @transform_2(%arg0: i32) -> (i32, i32) {
    %c0_i32 = arith.constant 0 : i32
    %c0_i32_0 = arith.constant 0 : i32
    %c0_i32_1 = arith.constant 0 : i32
    return %c0_i32, %c0_i32_0 : i32, i32
  }
  func.func @transform_3(%arg0: i32) -> (i32, i32) {
    %c0_i32 = arith.constant 0 : i32
    %c0_i32_0 = arith.constant 0 : i32
    %c0_i32_1 = arith.constant 0 : i32
    return %c0_i32, %c0_i32_0 : i32, i32
  }
  func.func @transform_4(%arg0: i32) -> (i32, i32) {
    %c0_i32 = arith.constant 0 : i32
    %c0_i32_0 = arith.constant 0 : i32
    %c0_i32_1 = arith.constant 0 : i32
    return %c0_i32, %c0_i32_0 : i32, i32
  }
  func.func @transform_5(%arg0: i32) -> (i32, i32) {
    %c0_i32 = arith.constant 0 : i32
    %c0_i32_0 = arith.constant 0 : i32
    %c0_i32_1 = arith.constant 0 : i32
    return %c0_i32, %c0_i32_0 : i32, i32
  }
  func.func @transform_6(%arg0: i32) -> (i32, i32) {
    %c0_i32 = arith.constant 0 : i32
    %c0_i32_0 = arith.constant 0 : i32
    %c0_i32_1 = arith.constant 0 : i32
    return %c0_i32, %c0_i32_0 : i32, i32
  }
  func.func @transform_7(%arg0: i32) -> (i32, i32) {
    %c0_i32 = arith.constant 0 : i32
    %c0_i32_0 = arith.constant 0 : i32
    return %arg0, %c0_i32 : i32, i32
  }
}

module attributes {stable_mosaic.version = 11 : i64} {
  func.func @_mlp_gates_kernel(%arg0: i32, %arg1: memref<64x16xf32, #tpu.memory_space<vmem>>, %arg2: memref<16x32xf32, #tpu.memory_space<vmem>>, %arg3: memref<1x32xf32, #tpu.memory_space<vmem>>, %arg4: memref<32x16xf32, #tpu.memory_space<vmem>>, %arg5: memref<1x16xf32, #tpu.memory_space<vmem>>, %arg6: memref<16x512xf32, #tpu.memory_space<vmem>>, %arg7: memref<1x512xf32, #tpu.memory_space<vmem>>, %arg8: memref<64x512xf32, #tpu.memory_space<vmem>>) attributes {dimension_semantics = [#tpu.dimension_semantics<parallel>], iteration_bounds = array<i64: 1>, scalar_prefetch = 0 : i64, scratch_operands = 0 : i64, tpu.core_type = #tpu.core_type<tc>, window_params = [{transform_indices = @transform_0, window_bounds = array<i64: 64, 16>}, {pipeline_mode = #tpu.pipeline_mode<synchronous>, transform_indices = @transform_1, window_bounds = array<i64: 16, 32>}, {pipeline_mode = #tpu.pipeline_mode<synchronous>, transform_indices = @transform_2, window_bounds = array<i64: 1, 32>}, {pipeline_mode = #tpu.pipeline_mode<synchronous>, transform_indices = @transform_3, window_bounds = array<i64: 32, 16>}, {pipeline_mode = #tpu.pipeline_mode<synchronous>, transform_indices = @transform_4, window_bounds = array<i64: 1, 16>}, {pipeline_mode = #tpu.pipeline_mode<synchronous>, transform_indices = @transform_5, window_bounds = array<i64: 16, 512>}, {pipeline_mode = #tpu.pipeline_mode<synchronous>, transform_indices = @transform_6, window_bounds = array<i64: 1, 512>}, {transform_indices = @transform_7, window_bounds = array<i64: 64, 512>}]} {
    %c0 = arith.constant 0 : index
    %c0_0 = arith.constant 0 : index
    %0 = vector.load %arg1[%c0, %c0_0] : memref<64x16xf32, #tpu.memory_space<vmem>>, vector<64x16xf32>
    %c0_1 = arith.constant 0 : index
    %c0_2 = arith.constant 0 : index
    %1 = vector.load %arg2[%c0_1, %c0_2] : memref<16x32xf32, #tpu.memory_space<vmem>>, vector<16x32xf32>
    %cst = arith.constant dense<0.000000e+00> : vector<64x32xf32>
    %2 = tpu.matmul %0, %1, %cst {dimension_numbers = #tpu.dot_dimension_numbers<[1], [0], [0], [1], [0, 0, 1, 1], [], []>} : vector<64x16xf32>, vector<16x32xf32>, vector<64x32xf32> -> vector<64x32xf32>
    %c0_3 = arith.constant 0 : index
    %c0_4 = arith.constant 0 : index
    %3 = vector.load %arg3[%c0_3, %c0_4] : memref<1x32xf32, #tpu.memory_space<vmem>>, vector<1x32xf32>
    %4 = vector.broadcast %3 : vector<1x32xf32> to vector<64x32xf32>
    %5 = arith.addf %2, %4 : vector<64x32xf32>
    %cst_5 = arith.constant 0.000000e+00 : f32
    %6 = vector.broadcast %cst_5 : f32 to vector<64x32xf32>
    %7 = arith.maximumf %5, %6 : vector<64x32xf32>
    %c0_6 = arith.constant 0 : index
    %c0_7 = arith.constant 0 : index
    %8 = vector.load %arg4[%c0_6, %c0_7] : memref<32x16xf32, #tpu.memory_space<vmem>>, vector<32x16xf32>
    %cst_8 = arith.constant dense<0.000000e+00> : vector<64x16xf32>
    %9 = tpu.matmul %7, %8, %cst_8 {dimension_numbers = #tpu.dot_dimension_numbers<[1], [0], [0], [1], [0, 0, 1, 1], [], []>} : vector<64x32xf32>, vector<32x16xf32>, vector<64x16xf32> -> vector<64x16xf32>
    %c0_9 = arith.constant 0 : index
    %c0_10 = arith.constant 0 : index
    %10 = vector.load %arg5[%c0_9, %c0_10] : memref<1x16xf32, #tpu.memory_space<vmem>>, vector<1x16xf32>
    %11 = vector.broadcast %10 : vector<1x16xf32> to vector<64x16xf32>
    %12 = arith.addf %9, %11 : vector<64x16xf32>
    %c0_11 = arith.constant 0 : index
    %c0_12 = arith.constant 0 : index
    %13 = vector.load %arg6[%c0_11, %c0_12] : memref<16x512xf32, #tpu.memory_space<vmem>>, vector<16x512xf32>
    %cst_13 = arith.constant dense<0.000000e+00> : vector<64x512xf32>
    %14 = tpu.matmul %12, %13, %cst_13 {dimension_numbers = #tpu.dot_dimension_numbers<[1], [0], [0], [1], [0, 0, 1, 1], [], []>} : vector<64x16xf32>, vector<16x512xf32>, vector<64x512xf32> -> vector<64x512xf32>
    %c0_14 = arith.constant 0 : index
    %c0_15 = arith.constant 0 : index
    %15 = vector.load %arg7[%c0_14, %c0_15] : memref<1x512xf32, #tpu.memory_space<vmem>>, vector<1x512xf32>
    %16 = vector.broadcast %15 : vector<1x512xf32> to vector<64x512xf32>
    %17 = arith.addf %14, %16 : vector<64x512xf32>
    %c0_16 = arith.constant 0 : index
    %c0_17 = arith.constant 0 : index
    %18 = vector.load %arg8[%c0_16, %c0_17] : memref<64x512xf32, #tpu.memory_space<vmem>>, vector<64x512xf32>
    tpu.vector_store %arg8[%c0_16, %c0_17], %17 {strides = array<i32>} : memref<64x512xf32, #tpu.memory_space<vmem>>, vector<64x512xf32>,
    return
  }
  func.func @transform_0(%arg0: i32) -> (i32, i32) {
    %c0_i32 = arith.constant 0 : i32
    %c0_i32_0 = arith.constant 0 : i32
    return %arg0, %c0_i32 : i32, i32
  }
  func.func @transform_1(%arg0: i32) -> (i32, i32) {
    %c0_i32 = arith.constant 0 : i32
    %c0_i32_0 = arith.constant 0 : i32
    %c0_i32_1 = arith.constant 0 : i32
    return %c0_i32, %c0_i32_0 : i32, i32
  }
  func.func @transform_2(%arg0: i32) -> (i32, i32) {
    %c0_i32 = arith.constant 0 : i32
    %c0_i32_0 = arith.constant 0 : i32
    %c0_i32_1 = arith.constant 0 : i32
    return %c0_i32, %c0_i32_0 : i32, i32
  }
  func.func @transform_3(%arg0: i32) -> (i32, i32) {
    %c0_i32 = arith.constant 0 : i32
    %c0_i32_0 = arith.constant 0 : i32
    %c0_i32_1 = arith.constant 0 : i32
    return %c0_i32, %c0_i32_0 : i32, i32
  }
  func.func @transform_4(%arg0: i32) -> (i32, i32) {
    %c0_i32 = arith.constant 0 : i32
    %c0_i32_0 = arith.constant 0 : i32
    %c0_i32_1 = arith.constant 0 : i32
    return %c0_i32, %c0_i32_0 : i32, i32
  }
  func.func @transform_5(%arg0: i32) -> (i32, i32) {
    %c0_i32 = arith.constant 0 : i32
    %c0_i32_0 = arith.constant 0 : i32
    %c0_i32_1 = arith.constant 0 : i32
    return %c0_i32, %c0_i32_0 : i32, i32
  }
  func.func @transform_6(%arg0: i32) -> (i32, i32) {
    %c0_i32 = arith.constant 0 : i32
    %c0_i32_0 = arith.constant 0 : i32
    %c0_i32_1 = arith.constant 0 : i32
    return %c0_i32, %c0_i32_0 : i32, i32
  }
  func.func @transform_7(%arg0: i32) -> (i32, i32) {
    %c0_i32 = arith.constant 0 : i32
    %c0_i32_0 = arith.constant 0 : i32
    return %arg0, %c0_i32 : i32, i32
  }
}

</mosaic_0001>

<llo_original>
// kernel: tpu_custom_call.1
$region0: #{tpu_custom_call.1}
  #allocation0 [shape = 'u32[]', space=smem, size = 0x4, offset = 0x4, fixed_abs, tag = 'smem constant byte address 0x4 - core index']
  #allocation1 [shape = 'u32[144,128]{1,0:T(1,128)}', space=vmem, size = 0x12000, scoped, tag = 'internal scratch']
  %s0 = inlined_call_operand.vmem [shape: f32[64,16], index: 0, kind: input, shape index: {}]
  %s1 = inlined_call_operand.vmem [shape: f32[16,32], index: 1, kind: input, shape index: {}]
  %s2 = inlined_call_operand.vmem [shape: f32[1,32], index: 2, kind: input, shape index: {}]
  %s3 = inlined_call_operand.vmem [shape: f32[32,16], index: 3, kind: input, shape index: {}]
  %s4 = inlined_call_operand.vmem [shape: f32[1,16], index: 4, kind: input, shape index: {}]
  %s5 = inlined_call_operand.vmem [shape: f32[16,512], index: 5, kind: input, shape index: {}]
  %s6 = inlined_call_operand.vmem [shape: f32[1,512], index: 6, kind: input, shape index: {}]
  %s7 = inlined_call_operand.hbm [shape: f32[64,512], index: 7, kind: output, shape index: {}]
  %s8 = sld [smem:[#allocation0]]
  $region38: #{tpu_custom_call.1} parent=0
    _
  %s10 = ssub.s32 1, %s8
  %s11 = scalar_select 0, %s10, %s8
  $region1: #{tpu_custom_call.1} parent=0
    #allocation2 [shape = 'u8[131072]{0}', space=vmem, size = 0x20000, scoped, tag = 'output window, operand 0, single buffered']
    #allocation3 [shape = 's32[1]{0}', space=sflag, size = 0x4, scoped, tag = 'scoped memory for tpu_custom_call.1']
    %12 = vsyncpa [#allocation3], 0
    // Predicated region
    $region2: #{tpu_custom_call.1} parent=1 // pred_check
      _
    $region3: #{tpu_custom_call.1} parent=1 // pred_check_branch
      %14 = sbr.rel (0) target = $region5
    $region4: #{tpu_custom_call.1} parent=1 // pred_region
      _
    $region5: #{tpu_custom_call.1} parent=1 // pred_fallthru
      _
    // Predicated region
    $region6: #{tpu_custom_call.1} parent=1 // pred_check
      _
    $region7: #{tpu_custom_call.1} parent=1 // pred_check_branch
      %16 = sbr.rel (0) target = $region9
    $region8: #{tpu_custom_call.1} parent=1 // pred_region
      _
    $region9: #{tpu_custom_call.1} parent=1 // pred_fallthru
      _
    // Predicated region
    $region10: #{tpu_custom_call.1} parent=1 // pred_check
      _
    $region11: #{tpu_custom_call.1} parent=1 // pred_check_branch
      %18 = sbr.rel (0) target = $region13
    $region12: #{tpu_custom_call.1} parent=1 // pred_region
      _
    $region13: #{tpu_custom_call.1} parent=1 // pred_fallthru
      _
    // Predicated region
    $region14: #{tpu_custom_call.1} parent=1 // pred_check
      _
    $region15: #{tpu_custom_call.1} parent=1 // pred_check_branch
      %20 = sbr.rel (0) target = $region17
    $region16: #{tpu_custom_call.1} parent=1 // pred_region
      _
    $region17: #{tpu_custom_call.1} parent=1 // pred_fallthru
      _
    // Predicated region
    $region18: #{tpu_custom_call.1} parent=1 // pred_check
      _
    $region19: #{tpu_custom_call.1} parent=1 // pred_check_branch
      %22 = sbr.rel (0) target = $region21
    $region20: #{tpu_custom_call.1} parent=1 // pred_region
      _
    $region21: #{tpu_custom_call.1} parent=1 // pred_fallthru
      _
    // Predicated region
    $region22: #{tpu_custom_call.1} parent=1 // pred_check
      _
    $region23: #{tpu_custom_call.1} parent=1 // pred_check_branch
      %24 = sbr.rel (0) target = $region25
    $region24: #{tpu_custom_call.1} parent=1 // pred_region
      _
    $region25: #{tpu_custom_call.1} parent=1 // pred_fallthru
      _
    // Predicated region
    $region26: #{tpu_custom_call.1} parent=1 // pred_check
      _
    $region27: #{tpu_custom_call.1} parent=1 // pred_check_branch
      %26 = sbr.rel (0) target = $region29
    $region28: #{tpu_custom_call.1} parent=1 // pred_region
      _
    $region29: #{tpu_custom_call.1} parent=1 // pred_fallthru
      _
    %v27 = vld [vmem:[%s0] sm:$0xff]
    %v28 = vld [vmem:[%s0 + $0x8] sm:$0xff]
    %v29 = vld [vmem:[%s0 + $0x10] sm:$0xff]
    %v30 = vld [vmem:[%s0 + $0x18] sm:$0xff]
    %v31 = vld [vmem:[%s0 + $0x20] sm:$0xff]
    %v32 = vld [vmem:[%s0 + $0x28] sm:$0xff]
    %v33 = vld [vmem:[%s0 + $0x30] sm:$0xff]
    %v34 = vld [vmem:[%s0 + $0x38] sm:$0xff]
    %v35 = vld [vmem:[%s1] sm:$0xff]
    %v36 = vld [vmem:[%s1 + $0x8] sm:$0xff]
    %v37 = vld [vmem:[%s2] sm:$0x1]
    %v39 = vlaneseq
    %v40 = vshrl.u32 %v39, 7
    %v41 = vsub.s32 0, %v40
    %v42 = vrot.slane %v37, %v41
    %vm44 = vcmask 130048
    %v46 = vsel %vm44, %v27, 0
    %v49 = vsel %vm44, %v28, 0
    %v52 = vsel %vm44, %v29, 0
    %v55 = vsel %vm44, %v30, 0
    %v58 = vsel %vm44, %v31, 0
    %v61 = vsel %vm44, %v32, 0
    %v64 = vsel %vm44, %v33, 0
    %v67 = vsel %vm44, %v34, 0
    %69 = vmatprep.subr.mxu0 0.0
    %70 = vmatpush1.msra.mxu0 0.0
    %71 = vmatprep.subr.mxu0 0.0
    %72 = vmatpush1.msra.mxu0 0.0
    %73 = vmatprep.subr.mxu0 0.0
    %74 = vmatpush1.msra.mxu0 0.0
    %75 = vmatprep.subr.mxu0 0.0
    %76 = vmatpush1.msra.mxu0 0.0
    %77 = vmatprep.subr.mxu0 0.0
    %78 = vmatpush1.msra.mxu0 0.0
    %79 = vmatprep.subr.mxu0 0.0
    %80 = vmatpush1.msra.mxu0 0.0
    %81 = vmatprep.subr.mxu0 0.0
    %82 = vmatpush1.msra.mxu0 0.0
    %83 = vmatprep.subr.mxu0 0.0
    %84 = vmatpush1.msra.mxu0 0.0
    %85 = vmatprep.subr.mxu0 0.0
    %86 = vmatpush1.msra.mxu0 0.0
    %87 = vmatprep.subr.mxu0 0.0
    %88 = vmatpush1.msra.mxu0 0.0
    %89 = vmatprep.subr.mxu0 0.0
    %90 = vmatpush1.msra.mxu0 0.0
    %91 = vmatprep.subr.mxu0 0.0
    %92 = vmatpush1.msra.mxu0 0.0
    %93 = vmatprep.subr.mxu0 0.0
    %94 = vmatpush1.msra.mxu0 0.0
    %95 = vmatprep.subr.mxu0 0.0
    %96 = vmatpush1.msra.mxu0 0.0
    %97 = vmatprep.subr.mxu0 0.0
    %98 = vmatpush1.msra.mxu0 %v36
    %99 = vmatprep.subr.mxu0 0.0
    %100 = vmatpush1.msra.mxu0 %v35
    %101 = vmatprep.subr.mxu0 0.0
    %102 = vmatpush2.msra.mxu0 0.0
    %103 = vmatprep.subr.mxu0 0.0
    %104 = vmatpush2.msra.mxu0 0.0
    %105 = vmatprep.subr.mxu0 0.0
    %106 = vmatpush2.msra.mxu0 0.0
    %107 = vmatprep.subr.mxu0 0.0
    %108 = vmatpush2.msra.mxu0 0.0
    %109 = vmatprep.subr.mxu0 0.0
    %110 = vmatpush2.msra.mxu0 0.0
    %111 = vmatprep.subr.mxu0 0.0
    %112 = vmatpush2.msra.mxu0 0.0
    %113 = vmatprep.subr.mxu0 0.0
    %114 = vmatpush2.msra.mxu0 0.0
    %115 = vmatprep.subr.mxu0 0.0
    %116 = vmatpush2.msra.mxu0 0.0
    %117 = vmatprep.subr.mxu0 0.0
    %118 = vmatpush2.msra.mxu0 0.0
    %119 = vmatprep.subr.mxu0 0.0
    %120 = vmatpush2.msra.mxu0 0.0
    %121 = vmatprep.subr.mxu0 0.0
    %122 = vmatpush2.msra.mxu0 0.0
    %123 = vmatprep.subr.mxu0 0.0
    %124 = vmatpush2.msra.mxu0 0.0
    %125 = vmatprep.subr.mxu0 0.0
    %126 = vmatpush2.msra.mxu0 0.0
    %127 = vmatprep.subr.mxu0 0.0
    %128 = vmatpush2.msra.mxu0 0.0
    %129 = vmatprep.subr.mxu0 0.0
    %130 = vmatpush2.msra.mxu0 0.0
    %131 = vmatprep.subr.mxu0 0.0
    %132 = vmatpush2.msra.mxu0 0.0
    %133 = vmatprep.mubr.f32.mxu0 0.0
    %134 = vmatmul.mubr.f32.gmra.mxu0 %v46
    %v135 = vpop.f32.mrf.mxu0
    %v136 = vadd.f32 %v42, %v135
    %v137 = vpop.f32.mrf.mxu0
    %138 = vmatprep.mubr.f32.mxu0 0.0
    %139 = vmatmul.mubr.f32.gmra.mxu0 %v49
    %v140 = vpop.f32.mrf.mxu0
    %v141 = vadd.f32 %v42, %v140
    %v142 = vpop.f32.mrf.mxu0
    %143 = vmatprep.mubr.f32.mxu0 0.0
    %144 = vmatmul.mubr.f32.gmra.mxu0 %v52
    %v145 = vpop.f32.mrf.mxu0
    %v146 = vadd.f32 %v42, %v145
    %v147 = vpop.f32.mrf.mxu0
    %148 = vmatprep.mubr.f32.mxu0 0.0
    %149 = vmatmul.mubr.f32.gmra.mxu0 %v55
    %v150 = vpop.f32.mrf.mxu0
    %v151 = vadd.f32 %v42, %v150
    %v152 = vpop.f32.mrf.mxu0
    %153 = vmatprep.mubr.f32.mxu0 0.0
    %154 = vmatmul.mubr.f32.gmra.mxu0 %v58
    %v155 = vpop.f32.mrf.mxu0
    %v156 = vadd.f32 %v42, %v155
    %v157 = vpop.f32.mrf.mxu0
    %158 = vmatprep.mubr.f32.mxu0 0.0
    %159 = vmatmul.mubr.f32.gmra.mxu0 %v61
    %v160 = vpop.f32.mrf.mxu0
    %v161 = vadd.f32 %v42, %v160
    %v162 = vpop.f32.mrf.mxu0
    %163 = vmatprep.mubr.f32.mxu0 0.0
    %164 = vmatmul.mubr.f32.gmra.mxu0 %v64
    %v165 = vpop.f32.mrf.mxu0
    %v166 = vadd.f32 %v42, %v165
    %v167 = vpop.f32.mrf.mxu0
    %168 = vmatprep.mubr.f32.mxu0 0.0
    %169 = vmatmul.mubr.f32.gmra.mxu0 %v67
    %v170 = vpop.f32.mrf.mxu0
    %v171 = vadd.f32 %v42, %v170
    %v172 = vpop.f32.mrf.mxu0
    %173 = vdwg.mxu0
    %v174 = vmax.f32 %v136, 0.0
    %v175 = vmax.f32 %v141, 0.0
    %v176 = vmax.f32 %v146, 0.0
    %v177 = vmax.f32 %v151, 0.0
    %v178 = vmax.f32 %v156, 0.0
    %v179 = vmax.f32 %v161, 0.0
    %v180 = vmax.f32 %v166, 0.0
    %v181 = vmax.f32 %v171, 0.0
    %v182 = vld [vmem:[%s3] sm:$0xff]
    %v183 = vld [vmem:[%s3 + $0x8] sm:$0xff]
    %v184 = vld [vmem:[%s3 + $0x10] sm:$0xff]
    %v185 = vld [vmem:[%s3 + $0x18] sm:$0xff]
    %v186 = vld [vmem:[%s4] sm:$0x1]
    %v188 = vlaneseq
    %v189 = vshrl.u32 %v188, 7
    %v190 = vsub.s32 0, %v189
    %v191 = vrot.slane %v186, %v190
    %vm193 = vcmask 261120
    %v195 = vsel %vm193, %v174, 0
    %v198 = vsel %vm193, %v175, 0
    %v201 = vsel %vm193, %v176, 0
    %v204 = vsel %vm193, %v177, 0
    %v207 = vsel %vm193, %v178, 0
    %v210 = vsel %vm193, %v179, 0
    %v213 = vsel %vm193, %v180, 0
    %v216 = vsel %vm193, %v181, 0
    %218 = vmatprep.subr.mxu0 0.0
    %219 = vmatpush1.msra.mxu0 0.0
    %220 = vmatprep.subr.mxu0 0.0
    %221 = vmatpush1.msra.mxu0 0.0
    %222 = vmatprep.subr.mxu0 0.0
    %223 = vmatpush1.msra.mxu0 0.0
    %224 = vmatprep.subr.mxu0 0.0
    %225 = vmatpush1.msra.mxu0 0.0
    %226 = vmatprep.subr.mxu0 0.0
    %227 = vmatpush1.msra.mxu0 0.0
    %228 = vmatprep.subr.mxu0 0.0
    %229 = vmatpush1.msra.mxu0 0.0
    %230 = vmatprep.subr.mxu0 0.0
    %231 = vmatpush1.msra.mxu0 0.0
    %232 = vmatprep.subr.mxu0 0.0
    %233 = vmatpush1.msra.mxu0 0.0
    %234 = vmatprep.subr.mxu0 0.0
    %235 = vmatpush1.msra.mxu0 0.0
    %236 = vmatprep.subr.mxu0 0.0
    %237 = vmatpush1.msra.mxu0 0.0
    %238 = vmatprep.subr.mxu0 0.0
    %239 = vmatpush1.msra.mxu0 0.0
    %240 = vmatprep.subr.mxu0 0.0
    %241 = vmatpush1.msra.mxu0 0.0
    %242 = vmatprep.subr.mxu0 0.0
    %243 = vmatpush1.msra.mxu0 %v185
    %244 = vmatprep.subr.mxu0 0.0
    %245 = vmatpush1.msra.mxu0 %v184
    %246 = vmatprep.subr.mxu0 0.0
    %247 = vmatpush1.msra.mxu0 %v183
    %248 = vmatprep.subr.mxu0 0.0
    %249 = vmatpush1.msra.mxu0 %v182
    %250 = vmatprep.subr.mxu0 0.0
    %251 = vmatpush2.msra.mxu0 0.0
    %252 = vmatprep.subr.mxu0 0.0
    %253 = vmatpush2.msra.mxu0 0.0
    %254 = vmatprep.subr.mxu0 0.0
    %255 = vmatpush2.msra.mxu0 0.0
    %256 = vmatprep.subr.mxu0 0.0
    %257 = vmatpush2.msra.mxu0 0.0
    %258 = vmatprep.subr.mxu0 0.0
    %259 = vmatpush2.msra.mxu0 0.0
    %260 = vmatprep.subr.mxu0 0.0
    %261 = vmatpush2.msra.mxu0 0.0
    %262 = vmatprep.subr.mxu0 0.0
    %263 = vmatpush2.msra.mxu0 0.0
    %264 = vmatprep.subr.mxu0 0.0
    %265 = vmatpush2.msra.mxu0 0.0
    %266 = vmatprep.subr.mxu0 0.0
    %267 = vmatpush2.msra.mxu0 0.0
    %268 = vmatprep.subr.mxu0 0.0
    %269 = vmatpush2.msra.mxu0 0.0
    %270 = vmatprep.subr.mxu0 0.0
    %271 = vmatpush2.msra.mxu0 0.0
    %272 = vmatprep.subr.mxu0 0.0
    %273 = vmatpush2.msra.mxu0 0.0
    %274 = vmatprep.subr.mxu0 0.0
    %275 = vmatpush2.msra.mxu0 0.0
    %276 = vmatprep.subr.mxu0 0.0
    %277 = vmatpush2.msra.mxu0 0.0
    %278 = vmatprep.subr.mxu0 0.0
    %279 = vmatpush2.msra.mxu0 0.0
    %280 = vmatprep.subr.mxu0 0.0
    %281 = vmatpush2.msra.mxu0 0.0
    %282 = vmatprep.mubr.f32.mxu0 0.0
    %283 = vmatmul.mubr.f32.gmra.mxu0 %v195
    %v284 = vpop.f32.mrf.mxu0
    %v285 = vadd.f32 %v191, %v284
    %v286 = vpop.f32.mrf.mxu0
    %287 = vmatprep.mubr.f32.mxu0 0.0
    %288 = vmatmul.mubr.f32.gmra.mxu0 %v198
    %v289 = vpop.f32.mrf.mxu0
    %v290 = vadd.f32 %v191, %v289
    %v291 = vpop.f32.mrf.mxu0
    %292 = vmatprep.mubr.f32.mxu0 0.0
    %293 = vmatmul.mubr.f32.gmra.mxu0 %v201
    %v294 = vpop.f32.mrf.mxu0
    %v295 = vadd.f32 %v191, %v294
    %v296 = vpop.f32.mrf.mxu0
    %297 = vmatprep.mubr.f32.mxu0 0.0
    %298 = vmatmul.mubr.f32.gmra.mxu0 %v204
    %v299 = vpop.f32.mrf.mxu0
    %v300 = vadd.f32 %v191, %v299
    %v301 = vpop.f32.mrf.mxu0
    %302 = vmatprep.mubr.f32.mxu0 0.0
    %303 = vmatmul.mubr.f32.gmra.mxu0 %v207
    %v304 = vpop.f32.mrf.mxu0
    %v305 = vadd.f32 %v191, %v304
    %v306 = vpop.f32.mrf.mxu0
    %307 = vmatprep.mubr.f32.mxu0 0.0
    %308 = vmatmul.mubr.f32.gmra.mxu0 %v210
    %v309 = vpop.f32.mrf.mxu0
    %v310 = vadd.f32 %v191, %v309
    %v311 = vpop.f32.mrf.mxu0
    %312 = vmatprep.mubr.f32.mxu0 0.0
    %313 = vmatmul.mubr.f32.gmra.mxu0 %v213
    %v314 = vpop.f32.mrf.mxu0
    %v315 = vadd.f32 %v191, %v314
    %v316 = vpop.f32.mrf.mxu0
    %317 = vmatprep.mubr.f32.mxu0 0.0
    %318 = vmatmul.mubr.f32.gmra.mxu0 %v216
    %v319 = vpop.f32.mrf.mxu0
    %v320 = vadd.f32 %v191, %v319
    %v321 = vpop.f32.mrf.mxu0
    %322 = vdwg.mxu0
    %v323 = vld [vmem:[%s5] sm:$0xff]
    %v324 = vld [vmem:[%s5 + $0x8] sm:$0xff]
    %v325 = vld [vmem:[%s5 + $0x10] sm:$0xff]
    %v326 = vld [vmem:[%s5 + $0x18] sm:$0xff]
    %v327 = vld [vmem:[%s5 + $0x20] sm:$0xff]
    %v328 = vld [vmem:[%s5 + $0x28] sm:$0xff]
    %v329 = vld [vmem:[%s5 + $0x30] sm:$0xff]
    %v330 = vld [vmem:[%s5 + $0x38] sm:$0xff]
    %v331 = vld [vmem:[%s6] sm:$0xf]
    %v333 = vlaneseq
    %v334 = vshrl.u32 %v333, 7
    %v335 = vsub.s32 0, %v334
    %v336 = vrot.slane %v331, %v335
    %v337 = vlaneseq
    %v338 = vshrl.u32 %v337, 7
    %v339 = vsub.s32 1, %v338
    %v340 = vrot.slane %v331, %v339
    %v341 = vlaneseq
    %v342 = vshrl.u32 %v341, 7
    %v343 = vsub.s32 2, %v342
    %v344 = vrot.slane %v331, %v343
    %v345 = vlaneseq
    %v346 = vshrl.u32 %v345, 7
    %v347 = vsub.s32 3, %v346
    %v348 = vrot.slane %v331, %v347
    %v354 = vsel %vm44, %v285, 0
    %v357 = vsel %vm44, %v290, 0
    %v360 = vsel %vm44, %v295, 0
    %v363 = vsel %vm44, %v300, 0
    %v366 = vsel %vm44, %v305, 0
    %v369 = vsel %vm44, %v310, 0
    %v372 = vsel %vm44, %v315, 0
    %v375 = vsel %vm44, %v320, 0
    %377 = vmatprep.subr.mxu0 0.0
    %378 = vmatpush1.msra.mxu0 0.0
    %379 = vmatprep.subr.mxu0 0.0
    %380 = vmatpush1.msra.mxu0 0.0
    %381 = vmatprep.subr.mxu0 0.0
    %382 = vmatpush1.msra.mxu0 0.0
    %383 = vmatprep.subr.mxu0 0.0
    %384 = vmatpush1.msra.mxu0 0.0
    %385 = vmatprep.subr.mxu0 0.0
    %386 = vmatpush1.msra.mxu0 0.0
    %387 = vmatprep.subr.mxu0 0.0
    %388 = vmatpush1.msra.mxu0 0.0
    %389 = vmatprep.subr.mxu0 0.0
    %390 = vmatpush1.msra.mxu0 0.0
    %391 = vmatprep.subr.mxu0 0.0
    %392 = vmatpush1.msra.mxu0 0.0
    %393 = vmatprep.subr.mxu0 0.0
    %394 = vmatpush1.msra.mxu0 0.0
    %395 = vmatprep.subr.mxu0 0.0
    %396 = vmatpush1.msra.mxu0 0.0
    %397 = vmatprep.subr.mxu0 0.0
    %398 = vmatpush1.msra.mxu0 0.0
    %399 = vmatprep.subr.mxu0 0.0
    %400 = vmatpush1.msra.mxu0 0.0
    %401 = vmatprep.subr.mxu0 0.0
    %402 = vmatpush1.msra.mxu0 0.0
    %403 = vmatprep.subr.mxu0 0.0
    %404 = vmatpush1.msra.mxu0 0.0
    %405 = vmatprep.subr.mxu0 %v328
    %406 = vmatpush1.msra.mxu0 %v327
    %407 = vmatprep.subr.mxu0 %v324
    %408 = vmatpush1.msra.mxu0 %v323
    %409 = vmatprep.subr.mxu0 0.0
    %410 = vmatpush2.msra.mxu0 0.0
    %411 = vmatprep.subr.mxu0 0.0
    %412 = vmatpush2.msra.mxu0 0.0
    %413 = vmatprep.subr.mxu0 0.0
    %414 = vmatpush2.msra.mxu0 0.0
    %415 = vmatprep.subr.mxu0 0.0
    %416 = vmatpush2.msra.mxu0 0.0
    %417 = vmatprep.subr.mxu0 0.0
    %418 = vmatpush2.msra.mxu0 0.0
    %419 = vmatprep.subr.mxu0 0.0
    %420 = vmatpush2.msra.mxu0 0.0
    %421 = vmatprep.subr.mxu0 0.0
    %422 = vmatpush2.msra.mxu0 0.0
    %423 = vmatprep.subr.mxu0 0.0
    %424 = vmatpush2.msra.mxu0 0.0
    %425 = vmatprep.subr.mxu0 0.0
    %426 = vmatpush2.msra.mxu0 0.0
    %427 = vmatprep.subr.mxu0 0.0
    %428 = vmatpush2.msra.mxu0 0.0
    %429 = vmatprep.subr.mxu0 0.0
    %430 = vmatpush2.msra.mxu0 0.0
    %431 = vmatprep.subr.mxu0 0.0
    %432 = vmatpush2.msra.mxu0 0.0
    %433 = vmatprep.subr.mxu0 0.0
    %434 = vmatpush2.msra.mxu0 0.0
    %435 = vmatprep.subr.mxu0 0.0
    %436 = vmatpush2.msra.mxu0 0.0
    %437 = vmatprep.subr.mxu0 0.0
    %438 = vmatpush2.msra.mxu0 0.0
    %439 = vmatprep.subr.mxu0 0.0
    %440 = vmatpush2.msra.mxu0 0.0
    %441 = vmatprep.mubr.f32.mxu0 0.0
    %442 = vmatmul.mubr.f32.gmra.mxu0 %v354
    %v443 = vpop.f32.mrf.mxu0
    %v444 = vadd.f32 %v336, %v443
    %v445 = vpop.f32.mrf.mxu0
    %v446 = vadd.f32 %v340, %v445
    %447 = vmatprep.mubr.f32.mxu0 0.0
    %448 = vmatmul.mubr.f32.gmra.mxu0 %v357
    %v449 = vpop.f32.mrf.mxu0
    %v450 = vadd.f32 %v336, %v449
    %v451 = vpop.f32.mrf.mxu0
    %v452 = vadd.f32 %v340, %v451
    %453 = vmatprep.mubr.f32.mxu0 0.0
    %454 = vmatmul.mubr.f32.gmra.mxu0 %v360
    %v455 = vpop.f32.mrf.mxu0
    %v456 = vadd.f32 %v336, %v455
    %v457 = vpop.f32.mrf.mxu0
    %v458 = vadd.f32 %v340, %v457
    %459 = vmatprep.mubr.f32.mxu0 0.0
    %460 = vmatmul.mubr.f32.gmra.mxu0 %v363
    %v461 = vpop.f32.mrf.mxu0
    %v462 = vadd.f32 %v336, %v461
    %v463 = vpop.f32.mrf.mxu0
    %v464 = vadd.f32 %v340, %v463
    %465 = vmatprep.mubr.f32.mxu0 0.0
    %466 = vmatmul.mubr.f32.gmra.mxu0 %v366
    %v467 = vpop.f32.mrf.mxu0
    %v468 = vadd.f32 %v336, %v467
    %v469 = vpop.f32.mrf.mxu0
    %v470 = vadd.f32 %v340, %v469
    %471 = vmatprep.mubr.f32.mxu0 0.0
    %472 = vmatmul.mubr.f32.gmra.mxu0 %v369
    %v473 = vpop.f32.mrf.mxu0
    %v474 = vadd.f32 %v336, %v473
    %v475 = vpop.f32.mrf.mxu0
    %v476 = vadd.f32 %v340, %v475
    %477 = vmatprep.mubr.f32.mxu0 0.0
    %478 = vmatmul.mubr.f32.gmra.mxu0 %v372
    %v479 = vpop.f32.mrf.mxu0
    %v480 = vadd.f32 %v336, %v479
    %v481 = vpop.f32.mrf.mxu0
    %v482 = vadd.f32 %v340, %v481
    %483 = vmatprep.mubr.f32.mxu0 0.0
    %484 = vmatmul.mubr.f32.gmra.mxu0 %v375
    %v485 = vpop.f32.mrf.mxu0
    %v486 = vadd.f32 %v336, %v485
    %v487 = vpop.f32.mrf.mxu0
    %v488 = vadd.f32 %v340, %v487
    %489 = vdwg.mxu0
    %490 = vmatprep.subr.mxu0 0.0
    %491 = vmatpush1.msra.mxu0 0.0
    %492 = vmatprep.subr.mxu0 0.0
    %493 = vmatpush1.msra.mxu0 0.0
    %494 = vmatprep.subr.mxu0 0.0
    %495 = vmatpush1.msra.mxu0 0.0
    %496 = vmatprep.subr.mxu0 0.0
    %497 = vmatpush1.msra.mxu0 0.0
    %498 = vmatprep.subr.mxu0 0.0
    %499 = vmatpush1.msra.mxu0 0.0
    %500 = vmatprep.subr.mxu0 0.0
    %501 = vmatpush1.msra.mxu0 0.0
    %502 = vmatprep.subr.mxu0 0.0
    %503 = vmatpush1.msra.mxu0 0.0
    %504 = vmatprep.subr.mxu0 0.0
    %505 = vmatpush1.msra.mxu0 0.0
    %506 = vmatprep.subr.mxu0 0.0
    %507 = vmatpush1.msra.mxu0 0.0
    %508 = vmatprep.subr.mxu0 0.0
    %509 = vmatpush1.msra.mxu0 0.0
    %510 = vmatprep.subr.mxu0 0.0
    %511 = vmatpush1.msra.mxu0 0.0
    %512 = vmatprep.subr.mxu0 0.0
    %513 = vmatpush1.msra.mxu0 0.0
    %514 = vmatprep.subr.mxu0 0.0
    %515 = vmatpush1.msra.mxu0 0.0
    %516 = vmatprep.subr.mxu0 0.0
    %517 = vmatpush1.msra.mxu0 0.0
    %518 = vmatprep.subr.mxu0 %v330
    %519 = vmatpush1.msra.mxu0 %v329
    %520 = vmatprep.subr.mxu0 %v326
    %521 = vmatpush1.msra.mxu0 %v325
    %522 = vmatprep.subr.mxu0 0.0
    %523 = vmatpush2.msra.mxu0 0.0
    %524 = vmatprep.subr.mxu0 0.0
    %525 = vmatpush2.msra.mxu0 0.0
    %526 = vmatprep.subr.mxu0 0.0
    %527 = vmatpush2.msra.mxu0 0.0
    %528 = vmatprep.subr.mxu0 0.0
    %529 = vmatpush2.msra.mxu0 0.0
    %530 = vmatprep.subr.mxu0 0.0
    %531 = vmatpush2.msra.mxu0 0.0
    %532 = vmatprep.subr.mxu0 0.0
    %533 = vmatpush2.msra.mxu0 0.0
    %534 = vmatprep.subr.mxu0 0.0
    %535 = vmatpush2.msra.mxu0 0.0
    %536 = vmatprep.subr.mxu0 0.0
    %537 = vmatpush2.msra.mxu0 0.0
    %538 = vmatprep.subr.mxu0 0.0
    %539 = vmatpush2.msra.mxu0 0.0
    %540 = vmatprep.subr.mxu0 0.0
    %541 = vmatpush2.msra.mxu0 0.0
    %542 = vmatprep.subr.mxu0 0.0
    %543 = vmatpush2.msra.mxu0 0.0
    %544 = vmatprep.subr.mxu0 0.0
    %545 = vmatpush2.msra.mxu0 0.0
    %546 = vmatprep.subr.mxu0 0.0
    %547 = vmatpush2.msra.mxu0 0.0
    %548 = vmatprep.subr.mxu0 0.0
    %549 = vmatpush2.msra.mxu0 0.0
    %550 = vmatprep.subr.mxu0 0.0
    %551 = vmatpush2.msra.mxu0 0.0
    %552 = vmatprep.subr.mxu0 0.0
    %553 = vmatpush2.msra.mxu0 0.0
    %554 = vmatprep.mubr.f32.mxu0 0.0
    %555 = vmatmul.mubr.f32.gmra.mxu0 %v354
    %v556 = vpop.f32.mrf.mxu0
    %v557 = vadd.f32 %v344, %v556
    %v558 = vpop.f32.mrf.mxu0
    %v559 = vadd.f32 %v348, %v558
    %560 = vmatprep.mubr.f32.mxu0 0.0
    %561 = vmatmul.mubr.f32.gmra.mxu0 %v357
    %v562 = vpop.f32.mrf.mxu0
    %v563 = vadd.f32 %v344, %v562
    %v564 = vpop.f32.mrf.mxu0
    %v565 = vadd.f32 %v348, %v564
    %566 = vmatprep.mubr.f32.mxu0 0.0
    %567 = vmatmul.mubr.f32.gmra.mxu0 %v360
    %v568 = vpop.f32.mrf.mxu0
    %v569 = vadd.f32 %v344, %v568
    %v570 = vpop.f32.mrf.mxu0
    %v571 = vadd.f32 %v348, %v570
    %572 = vmatprep.mubr.f32.mxu0 0.0
    %573 = vmatmul.mubr.f32.gmra.mxu0 %v363
    %v574 = vpop.f32.mrf.mxu0
    %v575 = vadd.f32 %v344, %v574
    %v576 = vpop.f32.mrf.mxu0
    %v577 = vadd.f32 %v348, %v576
    %578 = vmatprep.mubr.f32.mxu0 0.0
    %579 = vmatmul.mubr.f32.gmra.mxu0 %v366
    %v580 = vpop.f32.mrf.mxu0
    %v581 = vadd.f32 %v344, %v580
    %v582 = vpop.f32.mrf.mxu0
    %v583 = vadd.f32 %v348, %v582
    %584 = vmatprep.mubr.f32.mxu0 0.0
    %585 = vmatmul.mubr.f32.gmra.mxu0 %v369
    %v586 = vpop.f32.mrf.mxu0
    %v587 = vadd.f32 %v344, %v586
    %v588 = vpop.f32.mrf.mxu0
    %v589 = vadd.f32 %v348, %v588
    %590 = vmatprep.mubr.f32.mxu0 0.0
    %591 = vmatmul.mubr.f32.gmra.mxu0 %v372
    %v592 = vpop.f32.mrf.mxu0
    %v593 = vadd.f32 %v344, %v592
    %v594 = vpop.f32.mrf.mxu0
    %v595 = vadd.f32 %v348, %v594
    %596 = vmatprep.mubr.f32.mxu0 0.0
    %597 = vmatmul.mubr.f32.gmra.mxu0 %v375
    %v598 = vpop.f32.mrf.mxu0
    %v599 = vadd.f32 %v344, %v598
    %v600 = vpop.f32.mrf.mxu0
    %v601 = vadd.f32 %v348, %v600
    %602 = vdwg.mxu0
    %603 = vst [vmem:[#allocation2] sm:$0xff] %v444
    %604 = vst [vmem:[#allocation2 + $0x8] sm:$0xff] %v446
    %605 = vst [vmem:[#allocation2 + $0x10] sm:$0xff] %v557
    %606 = vst [vmem:[#allocation2 + $0x18] sm:$0xff] %v559
    %607 = vst [vmem:[#allocation2 + $0x20] sm:$0xff] %v450
    %608 = vst [vmem:[#allocation2 + $0x28] sm:$0xff] %v452
    %609 = vst [vmem:[#allocation2 + $0x30] sm:$0xff] %v563
    %610 = vst [vmem:[#allocation2 + $0x38] sm:$0xff] %v565
    %611 = vst [vmem:[#allocation2 + $0x40] sm:$0xff] %v456
    %612 = vst [vmem:[#allocation2 + $0x48] sm:$0xff] %v458
    %613 = vst [vmem:[#allocation2 + $0x50] sm:$0xff] %v569
    %614 = vst [vmem:[#allocation2 + $0x58] sm:$0xff] %v571
    %615 = vst [vmem:[#allocation2 + $0x60] sm:$0xff] %v462
    %616 = vst [vmem:[#allocation2 + $0x68] sm:$0xff] %v464
    %617 = vst [vmem:[#allocation2 + $0x70] sm:$0xff] %v575
    %618 = vst [vmem:[#allocation2 + $0x78] sm:$0xff] %v577
    %619 = vst [vmem:[#allocation2 + $0x80] sm:$0xff] %v468
    %620 = vst [vmem:[#allocation2 + $0x88] sm:$0xff] %v470
    %621 = vst [vmem:[#allocation2 + $0x90] sm:$0xff] %v581
    %622 = vst [vmem:[#allocation2 + $0x98] sm:$0xff] %v583
    %623 = vst [vmem:[#allocation2 + $0xa0] sm:$0xff] %v474
    %624 = vst [vmem:[#allocation2 + $0xa8] sm:$0xff] %v476
    %625 = vst [vmem:[#allocation2 + $0xb0] sm:$0xff] %v587
    %626 = vst [vmem:[#allocation2 + $0xb8] sm:$0xff] %v589
    %627 = vst [vmem:[#allocation2 + $0xc0] sm:$0xff] %v480
    %628 = vst [vmem:[#allocation2 + $0xc8] sm:$0xff] %v482
    %629 = vst [vmem:[#allocation2 + $0xd0] sm:$0xff] %v593
    %630 = vst [vmem:[#allocation2 + $0xd8] sm:$0xff] %v595
    %631 = vst [vmem:[#allocation2 + $0xe0] sm:$0xff] %v486
    %632 = vst [vmem:[#allocation2 + $0xe8] sm:$0xff] %v488
    %633 = vst [vmem:[#allocation2 + $0xf0] sm:$0xff] %v599
    %634 = vst [vmem:[#allocation2 + $0xf8] sm:$0xff] %v601
    // Predicated region
    $region30: #{tpu_custom_call.1} parent=1 // pred_check
      _
    $region31: #{tpu_custom_call.1} parent=1 // pred_check_branch
      %636 = sbr.rel (0) target = $region33
    $region32: #{tpu_custom_call.1} parent=1 // pred_region
      %s638 = ssub.s32 4096, 4096
      %639 = vsyncadd [#allocation3], %s638
      %s640 = sshll.u32 [#allocation2], 4
      %s641 = int_to_ptr.vmem [resolvable:$true] %s640
      %646 = dma.vmem_to_hbm [thread:$0]  %s641, 4096, %s7, [#allocation3], 512, 512, 32
    $region33: #{tpu_custom_call.1} parent=1 // pred_fallthru
      _
    // Predicated region
    $region34: #{tpu_custom_call.1} parent=1 // pred_check
      _
    $region35: #{tpu_custom_call.1} parent=1 // pred_check_branch
      %648 = sbr.rel (0) target = $region37
    $region36: #{tpu_custom_call.1} parent=1 // pred_region
      %649 = dma.done [#allocation3], 4096
    $region37: #{tpu_custom_call.1} parent=1 // pred_fallthru
      _
    %650 = vsyncpa [#allocation3], 1

// kernel: tpu_custom_call.1
$region0: #{tpu_custom_call.1}
  #allocation0 [shape = 'u32[]', space=smem, size = 0x4, offset = 0x4, fixed_abs, tag = 'smem constant byte address 0x4 - core index']
  #allocation1 [shape = 'u32[144,128]{1,0:T(1,128)}', space=vmem, size = 0x12000, scoped, tag = 'internal scratch']
  %s0 = inlined_call_operand.vmem [shape: f32[64,16], index: 0, kind: input, shape index: {}]
  %s1 = inlined_call_operand.vmem [shape: f32[16,32], index: 1, kind: input, shape index: {}]
  %s2 = inlined_call_operand.vmem [shape: f32[1,32], index: 2, kind: input, shape index: {}]
  %s3 = inlined_call_operand.vmem [shape: f32[32,16], index: 3, kind: input, shape index: {}]
  %s4 = inlined_call_operand.vmem [shape: f32[1,16], index: 4, kind: input, shape index: {}]
  %s5 = inlined_call_operand.vmem [shape: f32[16,512], index: 5, kind: input, shape index: {}]
  %s6 = inlined_call_operand.vmem [shape: f32[1,512], index: 6, kind: input, shape index: {}]
  %s7 = inlined_call_operand.hbm [shape: f32[64,512], index: 7, kind: output, shape index: {}]
  %s8 = sld [smem:[#allocation0]]
  $region38: #{tpu_custom_call.1} parent=0
    _
  %s10 = ssub.s32 1, %s8
  %s11 = scalar_select 0, %s10, %s8
  $region1: #{tpu_custom_call.1} parent=0
    #allocation2 [shape = 'u8[131072]{0}', space=vmem, size = 0x20000, scoped, tag = 'output window, operand 0, single buffered']
    #allocation3 [shape = 's32[1]{0}', space=sflag, size = 0x4, scoped, tag = 'scoped memory for tpu_custom_call.1']
    %12 = vsyncpa [#allocation3], 0
    // Predicated region
    $region2: #{tpu_custom_call.1} parent=1 // pred_check
      _
    $region3: #{tpu_custom_call.1} parent=1 // pred_check_branch
      %14 = sbr.rel (0) target = $region5
    $region4: #{tpu_custom_call.1} parent=1 // pred_region
      _
    $region5: #{tpu_custom_call.1} parent=1 // pred_fallthru
      _
    // Predicated region
    $region6: #{tpu_custom_call.1} parent=1 // pred_check
      _
    $region7: #{tpu_custom_call.1} parent=1 // pred_check_branch
      %16 = sbr.rel (0) target = $region9
    $region8: #{tpu_custom_call.1} parent=1 // pred_region
      _
    $region9: #{tpu_custom_call.1} parent=1 // pred_fallthru
      _
    // Predicated region
    $region10: #{tpu_custom_call.1} parent=1 // pred_check
      _
    $region11: #{tpu_custom_call.1} parent=1 // pred_check_branch
      %18 = sbr.rel (0) target = $region13
    $region12: #{tpu_custom_call.1} parent=1 // pred_region
      _
    $region13: #{tpu_custom_call.1} parent=1 // pred_fallthru
      _
    // Predicated region
    $region14: #{tpu_custom_call.1} parent=1 // pred_check
      _
    $region15: #{tpu_custom_call.1} parent=1 // pred_check_branch
      %20 = sbr.rel (0) target = $region17
    $region16: #{tpu_custom_call.1} parent=1 // pred_region
      _
    $region17: #{tpu_custom_call.1} parent=1 // pred_fallthru
      _
    // Predicated region
    $region18: #{tpu_custom_call.1} parent=1 // pred_check
      _
    $region19: #{tpu_custom_call.1} parent=1 // pred_check_branch
      %22 = sbr.rel (0) target = $region21
    $region20: #{tpu_custom_call.1} parent=1 // pred_region
      _
    $region21: #{tpu_custom_call.1} parent=1 // pred_fallthru
      _
    // Predicated region
    $region22: #{tpu_custom_call.1} parent=1 // pred_check
      _
    $region23: #{tpu_custom_call.1} parent=1 // pred_check_branch
      %24 = sbr.rel (0) target = $region25
    $region24: #{tpu_custom_call.1} parent=1 // pred_region
      _
    $region25: #{tpu_custom_call.1} parent=1 // pred_fallthru
      _
    // Predicated region
    $region26: #{tpu_custom_call.1} parent=1 // pred_check
      _
    $region27: #{tpu_custom_call.1} parent=1 // pred_check_branch
      %26 = sbr.rel (0) target = $region29
    $region28: #{tpu_custom_call.1} parent=1 // pred_region
      _
    $region29: #{tpu_custom_call.1} parent=1 // pred_fallthru
      _
    %v27 = vld [vmem:[%s0] sm:$0xff]
    %v28 = vld [vmem:[%s0 + $0x8] sm:$0xff]
    %v29 = vld [vmem:[%s0 + $0x10] sm:$0xff]
    %v30 = vld [vmem:[%s0 + $0x18] sm:$0xff]
    %v31 = vld [vmem:[%s0 + $0x20] sm:$0xff]
    %v32 = vld [vmem:[%s0 + $0x28] sm:$0xff]
    %v33 = vld [vmem:[%s0 + $0x30] sm:$0xff]
    %v34 = vld [vmem:[%s0 + $0x38] sm:$0xff]
    %v35 = vld [vmem:[%s1] sm:$0xff]
    %v36 = vld [vmem:[%s1 + $0x8] sm:$0xff]
    %v37 = vld [vmem:[%s2] sm:$0x1]
    %v39 = vlaneseq
    %v40 = vshrl.u32 %v39, 7
    %v41 = vsub.s32 0, %v40
    %v42 = vrot.slane %v37, %v41
    %vm44 = vcmask 130048
    %v46 = vsel %vm44, %v27, 0
    %v49 = vsel %vm44, %v28, 0
    %v52 = vsel %vm44, %v29, 0
    %v55 = vsel %vm44, %v30, 0
    %v58 = vsel %vm44, %v31, 0
    %v61 = vsel %vm44, %v32, 0
    %v64 = vsel %vm44, %v33, 0
    %v67 = vsel %vm44, %v34, 0
    %69 = vmatprep.subr.mxu0 0.0
    %70 = vmatpush1.msra.mxu0 0.0
    %71 = vmatprep.subr.mxu0 0.0
    %72 = vmatpush1.msra.mxu0 0.0
    %73 = vmatprep.subr.mxu0 0.0
    %74 = vmatpush1.msra.mxu0 0.0
    %75 = vmatprep.subr.mxu0 0.0
    %76 = vmatpush1.msra.mxu0 0.0
    %77 = vmatprep.subr.mxu0 0.0
    %78 = vmatpush1.msra.mxu0 0.0
    %79 = vmatprep.subr.mxu0 0.0
    %80 = vmatpush1.msra.mxu0 0.0
    %81 = vmatprep.subr.mxu0 0.0
    %82 = vmatpush1.msra.mxu0 0.0
    %83 = vmatprep.subr.mxu0 0.0
    %84 = vmatpush1.msra.mxu0 0.0
    %85 = vmatprep.subr.mxu0 0.0
    %86 = vmatpush1.msra.mxu0 0.0
    %87 = vmatprep.subr.mxu0 0.0
    %88 = vmatpush1.msra.mxu0 0.0
    %89 = vmatprep.subr.mxu0 0.0
    %90 = vmatpush1.msra.mxu0 0.0
    %91 = vmatprep.subr.mxu0 0.0
    %92 = vmatpush1.msra.mxu0 0.0
    %93 = vmatprep.subr.mxu0 0.0
    %94 = vmatpush1.msra.mxu0 0.0
    %95 = vmatprep.subr.mxu0 0.0
    %96 = vmatpush1.msra.mxu0 0.0
    %97 = vmatprep.subr.mxu0 0.0
    %98 = vmatpush1.msra.mxu0 %v36
    %99 = vmatprep.subr.mxu0 0.0
    %100 = vmatpush1.msra.mxu0 %v35
    %101 = vmatprep.subr.mxu0 0.0
    %102 = vmatpush2.msra.mxu0 0.0
    %103 = vmatprep.subr.mxu0 0.0
    %104 = vmatpush2.msra.mxu0 0.0
    %105 = vmatprep.subr.mxu0 0.0
    %106 = vmatpush2.msra.mxu0 0.0
    %107 = vmatprep.subr.mxu0 0.0
    %108 = vmatpush2.msra.mxu0 0.0
    %109 = vmatprep.subr.mxu0 0.0
    %110 = vmatpush2.msra.mxu0 0.0
    %111 = vmatprep.subr.mxu0 0.0
    %112 = vmatpush2.msra.mxu0 0.0
    %113 = vmatprep.subr.mxu0 0.0
    %114 = vmatpush2.msra.mxu0 0.0
    %115 = vmatprep.subr.mxu0 0.0
    %116 = vmatpush2.msra.mxu0 0.0
    %117 = vmatprep.subr.mxu0 0.0
    %118 = vmatpush2.msra.mxu0 0.0
    %119 = vmatprep.subr.mxu0 0.0
    %120 = vmatpush2.msra.mxu0 0.0
    %121 = vmatprep.subr.mxu0 0.0
    %122 = vmatpush2.msra.mxu0 0.0
    %123 = vmatprep.subr.mxu0 0.0
    %124 = vmatpush2.msra.mxu0 0.0
    %125 = vmatprep.subr.mxu0 0.0
    %126 = vmatpush2.msra.mxu0 0.0
    %127 = vmatprep.subr.mxu0 0.0
    %128 = vmatpush2.msra.mxu0 0.0
    %129 = vmatprep.subr.mxu0 0.0
    %130 = vmatpush2.msra.mxu0 0.0
    %131 = vmatprep.subr.mxu0 0.0
    %132 = vmatpush2.msra.mxu0 0.0
    %133 = vmatprep.mubr.f32.mxu0 0.0
    %134 = vmatmul.mubr.f32.gmra.mxu0 %v46
    %v135 = vpop.f32.mrf.mxu0
    %v136 = vadd.f32 %v42, %v135
    %v137 = vpop.f32.mrf.mxu0
    %138 = vmatprep.mubr.f32.mxu0 0.0
    %139 = vmatmul.mubr.f32.gmra.mxu0 %v49
    %v140 = vpop.f32.mrf.mxu0
    %v141 = vadd.f32 %v42, %v140
    %v142 = vpop.f32.mrf.mxu0
    %143 = vmatprep.mubr.f32.mxu0 0.0
    %144 = vmatmul.mubr.f32.gmra.mxu0 %v52
    %v145 = vpop.f32.mrf.mxu0
    %v146 = vadd.f32 %v42, %v145
    %v147 = vpop.f32.mrf.mxu0
    %148 = vmatprep.mubr.f32.mxu0 0.0
    %149 = vmatmul.mubr.f32.gmra.mxu0 %v55
    %v150 = vpop.f32.mrf.mxu0
    %v151 = vadd.f32 %v42, %v150
    %v152 = vpop.f32.mrf.mxu0
    %153 = vmatprep.mubr.f32.mxu0 0.0
    %154 = vmatmul.mubr.f32.gmra.mxu0 %v58
    %v155 = vpop.f32.mrf.mxu0
    %v156 = vadd.f32 %v42, %v155
    %v157 = vpop.f32.mrf.mxu0
    %158 = vmatprep.mubr.f32.mxu0 0.0
    %159 = vmatmul.mubr.f32.gmra.mxu0 %v61
    %v160 = vpop.f32.mrf.mxu0
    %v161 = vadd.f32 %v42, %v160
    %v162 = vpop.f32.mrf.mxu0
    %163 = vmatprep.mubr.f32.mxu0 0.0
    %164 = vmatmul.mubr.f32.gmra.mxu0 %v64
    %v165 = vpop.f32.mrf.mxu0
    %v166 = vadd.f32 %v42, %v165
    %v167 = vpop.f32.mrf.mxu0
    %168 = vmatprep.mubr.f32.mxu0 0.0
    %169 = vmatmul.mubr.f32.gmra.mxu0 %v67
    %v170 = vpop.f32.mrf.mxu0
    %v171 = vadd.f32 %v42, %v170
    %v172 = vpop.f32.mrf.mxu0
    %173 = vdwg.mxu0
    %v174 = vmax.f32 %v136, 0.0
    %v175 = vmax.f32 %v141, 0.0
    %v176 = vmax.f32 %v146, 0.0
    %v177 = vmax.f32 %v151, 0.0
    %v178 = vmax.f32 %v156, 0.0
    %v179 = vmax.f32 %v161, 0.0
    %v180 = vmax.f32 %v166, 0.0
    %v181 = vmax.f32 %v171, 0.0
    %v182 = vld [vmem:[%s3] sm:$0xff]
    %v183 = vld [vmem:[%s3 + $0x8] sm:$0xff]
    %v184 = vld [vmem:[%s3 + $0x10] sm:$0xff]
    %v185 = vld [vmem:[%s3 + $0x18] sm:$0xff]
    %v186 = vld [vmem:[%s4] sm:$0x1]
    %v188 = vlaneseq
    %v189 = vshrl.u32 %v188, 7
    %v190 = vsub.s32 0, %v189
    %v191 = vrot.slane %v186, %v190
    %vm193 = vcmask 261120
    %v195 = vsel %vm193, %v174, 0
    %v198 = vsel %vm193, %v175, 0
    %v201 = vsel %vm193, %v176, 0
    %v204 = vsel %vm193, %v177, 0
    %v207 = vsel %vm193, %v178, 0
    %v210 = vsel %vm193, %v179, 0
    %v213 = vsel %vm193, %v180, 0
    %v216 = vsel %vm193, %v181, 0
    %218 = vmatprep.subr.mxu0 0.0
    %219 = vmatpush1.msra.mxu0 0.0
    %220 = vmatprep.subr.mxu0 0.0
    %221 = vmatpush1.msra.mxu0 0.0
    %222 = vmatprep.subr.mxu0 0.0
    %223 = vmatpush1.msra.mxu0 0.0
    %224 = vmatprep.subr.mxu0 0.0
    %225 = vmatpush1.msra.mxu0 0.0
    %226 = vmatprep.subr.mxu0 0.0
    %227 = vmatpush1.msra.mxu0 0.0
    %228 = vmatprep.subr.mxu0 0.0
    %229 = vmatpush1.msra.mxu0 0.0
    %230 = vmatprep.subr.mxu0 0.0
    %231 = vmatpush1.msra.mxu0 0.0
    %232 = vmatprep.subr.mxu0 0.0
    %233 = vmatpush1.msra.mxu0 0.0
    %234 = vmatprep.subr.mxu0 0.0
    %235 = vmatpush1.msra.mxu0 0.0
    %236 = vmatprep.subr.mxu0 0.0
    %237 = vmatpush1.msra.mxu0 0.0
    %238 = vmatprep.subr.mxu0 0.0
    %239 = vmatpush1.msra.mxu0 0.0
    %240 = vmatprep.subr.mxu0 0.0
    %241 = vmatpush1.msra.mxu0 0.0
    %242 = vmatprep.subr.mxu0 0.0
    %243 = vmatpush1.msra.mxu0 %v185
    %244 = vmatprep.subr.mxu0 0.0
    %245 = vmatpush1.msra.mxu0 %v184
    %246 = vmatprep.subr.mxu0 0.0
    %247 = vmatpush1.msra.mxu0 %v183
    %248 = vmatprep.subr.mxu0 0.0
    %249 = vmatpush1.msra.mxu0 %v182
    %250 = vmatprep.subr.mxu0 0.0
    %251 = vmatpush2.msra.mxu0 0.0
    %252 = vmatprep.subr.mxu0 0.0
    %253 = vmatpush2.msra.mxu0 0.0
    %254 = vmatprep.subr.mxu0 0.0
    %255 = vmatpush2.msra.mxu0 0.0
    %256 = vmatprep.subr.mxu0 0.0
    %257 = vmatpush2.msra.mxu0 0.0
    %258 = vmatprep.subr.mxu0 0.0
    %259 = vmatpush2.msra.mxu0 0.0
    %260 = vmatprep.subr.mxu0 0.0
    %261 = vmatpush2.msra.mxu0 0.0
    %262 = vmatprep.subr.mxu0 0.0
    %263 = vmatpush2.msra.mxu0 0.0
    %264 = vmatprep.subr.mxu0 0.0
    %265 = vmatpush2.msra.mxu0 0.0
    %266 = vmatprep.subr.mxu0 0.0
    %267 = vmatpush2.msra.mxu0 0.0
    %268 = vmatprep.subr.mxu0 0.0
    %269 = vmatpush2.msra.mxu0 0.0
    %270 = vmatprep.subr.mxu0 0.0
    %271 = vmatpush2.msra.mxu0 0.0
    %272 = vmatprep.subr.mxu0 0.0
    %273 = vmatpush2.msra.mxu0 0.0
    %274 = vmatprep.subr.mxu0 0.0
    %275 = vmatpush2.msra.mxu0 0.0
    %276 = vmatprep.subr.mxu0 0.0
    %277 = vmatpush2.msra.mxu0 0.0
    %278 = vmatprep.subr.mxu0 0.0
    %279 = vmatpush2.msra.mxu0 0.0
    %280 = vmatprep.subr.mxu0 0.0
    %281 = vmatpush2.msra.mxu0 0.0
    %282 = vmatprep.mubr.f32.mxu0 0.0
    %283 = vmatmul.mubr.f32.gmra.mxu0 %v195
    %v284 = vpop.f32.mrf.mxu0
    %v285 = vadd.f32 %v191, %v284
    %v286 = vpop.f32.mrf.mxu0
    %287 = vmatprep.mubr.f32.mxu0 0.0
    %288 = vmatmul.mubr.f32.gmra.mxu0 %v198
    %v289 = vpop.f32.mrf.mxu0
    %v290 = vadd.f32 %v191, %v289
    %v291 = vpop.f32.mrf.mxu0
    %292 = vmatprep.mubr.f32.mxu0 0.0
    %293 = vmatmul.mubr.f32.gmra.mxu0 %v201
    %v294 = vpop.f32.mrf.mxu0
    %v295 = vadd.f32 %v191, %v294
    %v296 = vpop.f32.mrf.mxu0
    %297 = vmatprep.mubr.f32.mxu0 0.0
    %298 = vmatmul.mubr.f32.gmra.mxu0 %v204
    %v299 = vpop.f32.mrf.mxu0
    %v300 = vadd.f32 %v191, %v299
    %v301 = vpop.f32.mrf.mxu0
    %302 = vmatprep.mubr.f32.mxu0 0.0
    %303 = vmatmul.mubr.f32.gmra.mxu0 %v207
    %v304 = vpop.f32.mrf.mxu0
    %v305 = vadd.f32 %v191, %v304
    %v306 = vpop.f32.mrf.mxu0
    %307 = vmatprep.mubr.f32.mxu0 0.0
    %308 = vmatmul.mubr.f32.gmra.mxu0 %v210
    %v309 = vpop.f32.mrf.mxu0
    %v310 = vadd.f32 %v191, %v309
    %v311 = vpop.f32.mrf.mxu0
    %312 = vmatprep.mubr.f32.mxu0 0.0
    %313 = vmatmul.mubr.f32.gmra.mxu0 %v213
    %v314 = vpop.f32.mrf.mxu0
    %v315 = vadd.f32 %v191, %v314
    %v316 = vpop.f32.mrf.mxu0
    %317 = vmatprep.mubr.f32.mxu0 0.0
    %318 = vmatmul.mubr.f32.gmra.mxu0 %v216
    %v319 = vpop.f32.mrf.mxu0
    %v320 = vadd.f32 %v191, %v319
    %v321 = vpop.f32.mrf.mxu0
    %322 = vdwg.mxu0
    %v323 = vld [vmem:[%s5] sm:$0xff]
    %v324 = vld [vmem:[%s5 + $0x8] sm:$0xff]
    %v325 = vld [vmem:[%s5 + $0x10] sm:$0xff]
    %v326 = vld [vmem:[%s5 + $0x18] sm:$0xff]
    %v327 = vld [vmem:[%s5 + $0x20] sm:$0xff]
    %v328 = vld [vmem:[%s5 + $0x28] sm:$0xff]
    %v329 = vld [vmem:[%s5 + $0x30] sm:$0xff]
    %v330 = vld [vmem:[%s5 + $0x38] sm:$0xff]
    %v331 = vld [vmem:[%s6] sm:$0xf]
    %v333 = vlaneseq
    %v334 = vshrl.u32 %v333, 7
    %v335 = vsub.s32 0, %v334
    %v336 = vrot.slane %v331, %v335
    %v337 = vlaneseq
    %v338 = vshrl.u32 %v337, 7
    %v339 = vsub.s32 1, %v338
    %v340 = vrot.slane %v331, %v339
    %v341 = vlaneseq
    %v342 = vshrl.u32 %v341, 7
    %v343 = vsub.s32 2, %v342
    %v344 = vrot.slane %v331, %v343
    %v345 = vlaneseq
    %v346 = vshrl.u32 %v345, 7
    %v347 = vsub.s32 3, %v346
    %v348 = vrot.slane %v331, %v347
    %v354 = vsel %vm44, %v285, 0
    %v357 = vsel %vm44, %v290, 0
    %v360 = vsel %vm44, %v295, 0
    %v363 = vsel %vm44, %v300, 0
    %v366 = vsel %vm44, %v305, 0
    %v369 = vsel %vm44, %v310, 0
    %v372 = vsel %vm44, %v315, 0
    %v375 = vsel %vm44, %v320, 0
    %377 = vmatprep.subr.mxu0 0.0
    %378 = vmatpush1.msra.mxu0 0.0
    %379 = vmatprep.subr.mxu0 0.0
    %380 = vmatpush1.msra.mxu0 0.0
    %381 = vmatprep.subr.mxu0 0.0
    %382 = vmatpush1.msra.mxu0 0.0
    %383 = vmatprep.subr.mxu0 0.0
    %384 = vmatpush1.msra.mxu0 0.0
    %385 = vmatprep.subr.mxu0 0.0
    %386 = vmatpush1.msra.mxu0 0.0
    %387 = vmatprep.subr.mxu0 0.0
    %388 = vmatpush1.msra.mxu0 0.0
    %389 = vmatprep.subr.mxu0 0.0
    %390 = vmatpush1.msra.mxu0 0.0
    %391 = vmatprep.subr.mxu0 0.0
    %392 = vmatpush1.msra.mxu0 0.0
    %393 = vmatprep.subr.mxu0 0.0
    %394 = vmatpush1.msra.mxu0 0.0
    %395 = vmatprep.subr.mxu0 0.0
    %396 = vmatpush1.msra.mxu0 0.0
    %397 = vmatprep.subr.mxu0 0.0
    %398 = vmatpush1.msra.mxu0 0.0
    %399 = vmatprep.subr.mxu0 0.0
    %400 = vmatpush1.msra.mxu0 0.0
    %401 = vmatprep.subr.mxu0 0.0
    %402 = vmatpush1.msra.mxu0 0.0
    %403 = vmatprep.subr.mxu0 0.0
    %404 = vmatpush1.msra.mxu0 0.0
    %405 = vmatprep.subr.mxu0 %v328
    %406 = vmatpush1.msra.mxu0 %v327
    %407 = vmatprep.subr.mxu0 %v324
    %408 = vmatpush1.msra.mxu0 %v323
    %409 = vmatprep.subr.mxu0 0.0
    %410 = vmatpush2.msra.mxu0 0.0
    %411 = vmatprep.subr.mxu0 0.0
    %412 = vmatpush2.msra.mxu0 0.0
    %413 = vmatprep.subr.mxu0 0.0
    %414 = vmatpush2.msra.mxu0 0.0
    %415 = vmatprep.subr.mxu0 0.0
    %416 = vmatpush2.msra.mxu0 0.0
    %417 = vmatprep.subr.mxu0 0.0
    %418 = vmatpush2.msra.mxu0 0.0
    %419 = vmatprep.subr.mxu0 0.0
    %420 = vmatpush2.msra.mxu0 0.0
    %421 = vmatprep.subr.mxu0 0.0
    %422 = vmatpush2.msra.mxu0 0.0
    %423 = vmatprep.subr.mxu0 0.0
    %424 = vmatpush2.msra.mxu0 0.0
    %425 = vmatprep.subr.mxu0 0.0
    %426 = vmatpush2.msra.mxu0 0.0
    %427 = vmatprep.subr.mxu0 0.0
    %428 = vmatpush2.msra.mxu0 0.0
    %429 = vmatprep.subr.mxu0 0.0
    %430 = vmatpush2.msra.mxu0 0.0
    %431 = vmatprep.subr.mxu0 0.0
    %432 = vmatpush2.msra.mxu0 0.0
    %433 = vmatprep.subr.mxu0 0.0
    %434 = vmatpush2.msra.mxu0 0.0
    %435 = vmatprep.subr.mxu0 0.0
    %436 = vmatpush2.msra.mxu0 0.0
    %437 = vmatprep.subr.mxu0 0.0
    %438 = vmatpush2.msra.mxu0 0.0
    %439 = vmatprep.subr.mxu0 0.0
    %440 = vmatpush2.msra.mxu0 0.0
    %441 = vmatprep.mubr.f32.mxu0 0.0
    %442 = vmatmul.mubr.f32.gmra.mxu0 %v354
    %v443 = vpop.f32.mrf.mxu0
    %v444 = vadd.f32 %v336, %v443
    %v445 = vpop.f32.mrf.mxu0
    %v446 = vadd.f32 %v340, %v445
    %447 = vmatprep.mubr.f32.mxu0 0.0
    %448 = vmatmul.mubr.f32.gmra.mxu0 %v357
    %v449 = vpop.f32.mrf.mxu0
    %v450 = vadd.f32 %v336, %v449
    %v451 = vpop.f32.mrf.mxu0
    %v452 = vadd.f32 %v340, %v451
    %453 = vmatprep.mubr.f32.mxu0 0.0
    %454 = vmatmul.mubr.f32.gmra.mxu0 %v360
    %v455 = vpop.f32.mrf.mxu0
    %v456 = vadd.f32 %v336, %v455
    %v457 = vpop.f32.mrf.mxu0
    %v458 = vadd.f32 %v340, %v457
    %459 = vmatprep.mubr.f32.mxu0 0.0
    %460 = vmatmul.mubr.f32.gmra.mxu0 %v363
    %v461 = vpop.f32.mrf.mxu0
    %v462 = vadd.f32 %v336, %v461
    %v463 = vpop.f32.mrf.mxu0
    %v464 = vadd.f32 %v340, %v463
    %465 = vmatprep.mubr.f32.mxu0 0.0
    %466 = vmatmul.mubr.f32.gmra.mxu0 %v366
    %v467 = vpop.f32.mrf.mxu0
    %v468 = vadd.f32 %v336, %v467
    %v469 = vpop.f32.mrf.mxu0
    %v470 = vadd.f32 %v340, %v469
    %471 = vmatprep.mubr.f32.mxu0 0.0
    %472 = vmatmul.mubr.f32.gmra.mxu0 %v369
    %v473 = vpop.f32.mrf.mxu0
    %v474 = vadd.f32 %v336, %v473
    %v475 = vpop.f32.mrf.mxu0
    %v476 = vadd.f32 %v340, %v475
    %477 = vmatprep.mubr.f32.mxu0 0.0
    %478 = vmatmul.mubr.f32.gmra.mxu0 %v372
    %v479 = vpop.f32.mrf.mxu0
    %v480 = vadd.f32 %v336, %v479
    %v481 = vpop.f32.mrf.mxu0
    %v482 = vadd.f32 %v340, %v481
    %483 = vmatprep.mubr.f32.mxu0 0.0
    %484 = vmatmul.mubr.f32.gmra.mxu0 %v375
    %v485 = vpop.f32.mrf.mxu0
    %v486 = vadd.f32 %v336, %v485
    %v487 = vpop.f32.mrf.mxu0
    %v488 = vadd.f32 %v340, %v487
    %489 = vdwg.mxu0
    %490 = vmatprep.subr.mxu0 0.0
    %491 = vmatpush1.msra.mxu0 0.0
    %492 = vmatprep.subr.mxu0 0.0
    %493 = vmatpush1.msra.mxu0 0.0
    %494 = vmatprep.subr.mxu0 0.0
    %495 = vmatpush1.msra.mxu0 0.0
    %496 = vmatprep.subr.mxu0 0.0
    %497 = vmatpush1.msra.mxu0 0.0
    %498 = vmatprep.subr.mxu0 0.0
    %499 = vmatpush1.msra.mxu0 0.0
    %500 = vmatprep.subr.mxu0 0.0
    %501 = vmatpush1.msra.mxu0 0.0
    %502 = vmatprep.subr.mxu0 0.0
    %503 = vmatpush1.msra.mxu0 0.0
    %504 = vmatprep.subr.mxu0 0.0
    %505 = vmatpush1.msra.mxu0 0.0
    %506 = vmatprep.subr.mxu0 0.0
    %507 = vmatpush1.msra.mxu0 0.0
    %508 = vmatprep.subr.mxu0 0.0
    %509 = vmatpush1.msra.mxu0 0.0
    %510 = vmatprep.subr.mxu0 0.0
    %511 = vmatpush1.msra.mxu0 0.0
    %512 = vmatprep.subr.mxu0 0.0
    %513 = vmatpush1.msra.mxu0 0.0
    %514 = vmatprep.subr.mxu0 0.0
    %515 = vmatpush1.msra.mxu0 0.0
    %516 = vmatprep.subr.mxu0 0.0
    %517 = vmatpush1.msra.mxu0 0.0
    %518 = vmatprep.subr.mxu0 %v330
    %519 = vmatpush1.msra.mxu0 %v329
    %520 = vmatprep.subr.mxu0 %v326
    %521 = vmatpush1.msra.mxu0 %v325
    %522 = vmatprep.subr.mxu0 0.0
    %523 = vmatpush2.msra.mxu0 0.0
    %524 = vmatprep.subr.mxu0 0.0
    %525 = vmatpush2.msra.mxu0 0.0
    %526 = vmatprep.subr.mxu0 0.0
    %527 = vmatpush2.msra.mxu0 0.0
    %528 = vmatprep.subr.mxu0 0.0
    %529 = vmatpush2.msra.mxu0 0.0
    %530 = vmatprep.subr.mxu0 0.0
    %531 = vmatpush2.msra.mxu0 0.0
    %532 = vmatprep.subr.mxu0 0.0
    %533 = vmatpush2.msra.mxu0 0.0
    %534 = vmatprep.subr.mxu0 0.0
    %535 = vmatpush2.msra.mxu0 0.0
    %536 = vmatprep.subr.mxu0 0.0
    %537 = vmatpush2.msra.mxu0 0.0
    %538 = vmatprep.subr.mxu0 0.0
    %539 = vmatpush2.msra.mxu0 0.0
    %540 = vmatprep.subr.mxu0 0.0
    %541 = vmatpush2.msra.mxu0 0.0
    %542 = vmatprep.subr.mxu0 0.0
    %543 = vmatpush2.msra.mxu0 0.0
    %544 = vmatprep.subr.mxu0 0.0
    %545 = vmatpush2.msra.mxu0 0.0
    %546 = vmatprep.subr.mxu0 0.0
    %547 = vmatpush2.msra.mxu0 0.0
    %548 = vmatprep.subr.mxu0 0.0
    %549 = vmatpush2.msra.mxu0 0.0
    %550 = vmatprep.subr.mxu0 0.0
    %551 = vmatpush2.msra.mxu0 0.0
    %552 = vmatprep.subr.mxu0 0.0
    %553 = vmatpush2.msra.mxu0 0.0
    %554 = vmatprep.mubr.f32.mxu0 0.0
    %555 = vmatmul.mubr.f32.gmra.mxu0 %v354
    %v556 = vpop.f32.mrf.mxu0
    %v557 = vadd.f32 %v344, %v556
    %v558 = vpop.f32.mrf.mxu0
    %v559 = vadd.f32 %v348, %v558
    %560 = vmatprep.mubr.f32.mxu0 0.0
    %561 = vmatmul.mubr.f32.gmra.mxu0 %v357
    %v562 = vpop.f32.mrf.mxu0
    %v563 = vadd.f32 %v344, %v562
    %v564 = vpop.f32.mrf.mxu0
    %v565 = vadd.f32 %v348, %v564
    %566 = vmatprep.mubr.f32.mxu0 0.0
    %567 = vmatmul.mubr.f32.gmra.mxu0 %v360
    %v568 = vpop.f32.mrf.mxu0
    %v569 = vadd.f32 %v344, %v568
    %v570 = vpop.f32.mrf.mxu0
    %v571 = vadd.f32 %v348, %v570
    %572 = vmatprep.mubr.f32.mxu0 0.0
    %573 = vmatmul.mubr.f32.gmra.mxu0 %v363
    %v574 = vpop.f32.mrf.mxu0
    %v575 = vadd.f32 %v344, %v574
    %v576 = vpop.f32.mrf.mxu0
    %v577 = vadd.f32 %v348, %v576
    %578 = vmatprep.mubr.f32.mxu0 0.0
    %579 = vmatmul.mubr.f32.gmra.mxu0 %v366
    %v580 = vpop.f32.mrf.mxu0
    %v581 = vadd.f32 %v344, %v580
    %v582 = vpop.f32.mrf.mxu0
    %v583 = vadd.f32 %v348, %v582
    %584 = vmatprep.mubr.f32.mxu0 0.0
    %585 = vmatmul.mubr.f32.gmra.mxu0 %v369
    %v586 = vpop.f32.mrf.mxu0
    %v587 = vadd.f32 %v344, %v586
    %v588 = vpop.f32.mrf.mxu0
    %v589 = vadd.f32 %v348, %v588
    %590 = vmatprep.mubr.f32.mxu0 0.0
    %591 = vmatmul.mubr.f32.gmra.mxu0 %v372
    %v592 = vpop.f32.mrf.mxu0
    %v593 = vadd.f32 %v344, %v592
    %v594 = vpop.f32.mrf.mxu0
    %v595 = vadd.f32 %v348, %v594
    %596 = vmatprep.mubr.f32.mxu0 0.0
    %597 = vmatmul.mubr.f32.gmra.mxu0 %v375
    %v598 = vpop.f32.mrf.mxu0
    %v599 = vadd.f32 %v344, %v598
    %v600 = vpop.f32.mrf.mxu0
    %v601 = vadd.f32 %v348, %v600
    %602 = vdwg.mxu0
    %603 = vst [vmem:[#allocation2] sm:$0xff] %v444
    %604 = vst [vmem:[#allocation2 + $0x8] sm:$0xff] %v446
    %605 = vst [vmem:[#allocation2 + $0x10] sm:$0xff] %v557
    %606 = vst [vmem:[#allocation2 + $0x18] sm:$0xff] %v559
    %607 = vst [vmem:[#allocation2 + $0x20] sm:$0xff] %v450
    %608 = vst [vmem:[#allocation2 + $0x28] sm:$0xff] %v452
    %609 = vst [vmem:[#allocation2 + $0x30] sm:$0xff] %v563
    %610 = vst [vmem:[#allocation2 + $0x38] sm:$0xff] %v565
    %611 = vst [vmem:[#allocation2 + $0x40] sm:$0xff] %v456
    %612 = vst [vmem:[#allocation2 + $0x48] sm:$0xff] %v458
    %613 = vst [vmem:[#allocation2 + $0x50] sm:$0xff] %v569
    %614 = vst [vmem:[#allocation2 + $0x58] sm:$0xff] %v571
    %615 = vst [vmem:[#allocation2 + $0x60] sm:$0xff] %v462
    %616 = vst [vmem:[#allocation2 + $0x68] sm:$0xff] %v464
    %617 = vst [vmem:[#allocation2 + $0x70] sm:$0xff] %v575
    %618 = vst [vmem:[#allocation2 + $0x78] sm:$0xff] %v577
    %619 = vst [vmem:[#allocation2 + $0x80] sm:$0xff] %v468
    %620 = vst [vmem:[#allocation2 + $0x88] sm:$0xff] %v470
    %621 = vst [vmem:[#allocation2 + $0x90] sm:$0xff] %v581
    %622 = vst [vmem:[#allocation2 + $0x98] sm:$0xff] %v583
    %623 = vst [vmem:[#allocation2 + $0xa0] sm:$0xff] %v474
    %624 = vst [vmem:[#allocation2 + $0xa8] sm:$0xff] %v476
    %625 = vst [vmem:[#allocation2 + $0xb0] sm:$0xff] %v587
    %626 = vst [vmem:[#allocation2 + $0xb8] sm:$0xff] %v589
    %627 = vst [vmem:[#allocation2 + $0xc0] sm:$0xff] %v480
    %628 = vst [vmem:[#allocation2 + $0xc8] sm:$0xff] %v482
    %629 = vst [vmem:[#allocation2 + $0xd0] sm:$0xff] %v593
    %630 = vst [vmem:[#allocation2 + $0xd8] sm:$0xff] %v595
    %631 = vst [vmem:[#allocation2 + $0xe0] sm:$0xff] %v486
    %632 = vst [vmem:[#allocation2 + $0xe8] sm:$0xff] %v488
    %633 = vst [vmem:[#allocation2 + $0xf0] sm:$0xff] %v599
    %634 = vst [vmem:[#allocation2 + $0xf8] sm:$0xff] %v601
    // Predicated region
    $region30: #{tpu_custom_call.1} parent=1 // pred_check
      _
    $region31: #{tpu_custom_call.1} parent=1 // pred_check_branch
      %636 = sbr.rel (0) target = $region33
    $region32: #{tpu_custom_call.1} parent=1 // pred_region
      %s638 = ssub.s32 4096, 4096
      %639 = vsyncadd [#allocation3], %s638
      %s640 = sshll.u32 [#allocation2], 4
      %s641 = int_to_ptr.vmem [resolvable:$true] %s640
      %646 = dma.vmem_to_hbm [thread:$0]  %s641, 4096, %s7, [#allocation3], 512, 512, 32
    $region33: #{tpu_custom_call.1} parent=1 // pred_fallthru
      _
    // Predicated region
    $region34: #{tpu_custom_call.1} parent=1 // pred_check
      _
    $region35: #{tpu_custom_call.1} parent=1 // pred_check_branch
      %648 = sbr.rel (0) target = $region37
    $region36: #{tpu_custom_call.1} parent=1 // pred_region
      %649 = dma.done [#allocation3], 4096
    $region37: #{tpu_custom_call.1} parent=1 // pred_fallthru
      _
    %650 = vsyncpa [#allocation3], 1

</llo_original>
